<compile_context>
chip_gen: v6e
topology: v6e:2x2x1
jax: 0.10.0
libtpu: 0.0.40
codegen_flags: <defaults>
</compile_context>

<pallas_src>
import functools

import numpy as np
import jax
import jax.numpy as jnp
from jax import lax
from jax.experimental import pallas as pl
from jax.experimental.pallas import tpu as pltpu

F32 = jnp.float32
BN_EPS = 1e-5
MAX_BT = 8   # samples unrolled per grid step (keeps kernel code size sane)


def _same_pad(k):
    """PyTorch padding='same' split (extra padding on the right for even k)."""
    total = k - 1
    left = total // 2
    return left, total - left


def _elu(x):
    # exact ELU (alpha=1); exp-based form (Mosaic-safe), guarded against overflow.
    return jnp.where(x > 0, x, jnp.exp(jnp.minimum(x, 0.0)) - 1.0)


# ---------------------------------------------------------------------------
# Fused EEGNet kernel: one grid step == Bt samples, everything stays in VMEM
# ---------------------------------------------------------------------------
def _make_kernel(*, Bt, C, T, T1, T2, DF1, F2, k1, k2, n_out, cdt):
    def kernel(x_ref, w12_ref, h2_ref, p1m_ref, w3_ref, h3_ref, p2m_ref,
               wc_ref, bc_ref, o_ref):
        feats = []
        for b in range(Bt):                                  # static unroll over batch tile
            xb = x_ref[0, b]                                 # (C, T + k1 - 1), host-padded
            # ---- conv1(+BN1) + grouped conv2(+BN2 scale) as ONE K=C*k1 matmul ----
            # im2col rows ordered tau-major: row tau*C + c == xp[c, t + tau]
            xcol = jnp.concatenate(
                [xb[:, tau:tau + T] for tau in range(k1)], axis=0)          # (C*k1, T)
            y2 = jnp.dot(w12_ref[...], xcol,
                         preferred_element_type=F32)                        # (DF1, T)
            a2 = _elu(y2 + h2_ref[...])                      # BN1-through-conv2 + BN2 shift

            # ---- AvgPool(1, p1); output already carries conv3's 'same' zero halo ----
            y2p = jnp.dot(a2.astype(cdt), p1m_ref[...],
                          preferred_element_type=F32)                        # (DF1, T1+k2-1)
            y2pc = y2p.astype(cdt)

            # ---- conv3 depthwise + pointwise (+BN3 scale) as ONE K=DF1*k2 matmul ----
            zcol = jnp.concatenate(
                [y2pc[:, tau:tau + T1] for tau in range(k2)], axis=0)        # (DF1*k2, T1)
            y3b = jnp.dot(w3_ref[...], zcol,
                          preferred_element_type=F32)                        # (F2, T1)
            a3 = _elu(y3b + h3_ref[...])                                     # BN3 shift + ELU

            # ---- AvgPool(1, p2) ----
            y3 = jnp.dot(a3.astype(cdt), p2m_ref[...],
                         preferred_element_type=F32)                         # (F2, T2)

            # ---- flatten channel-major -> lane-contiguous (1, F2*T2) ----
            feats.append(jnp.concatenate(
                [y3[f:f + 1, :] for f in range(F2)], axis=1))

        fm = jnp.concatenate(feats, axis=0)                                  # (Bt, n_dim)
        # ---- classifier: ONE (Bt, n_dim)@(n_dim, n_out) matmul + bias ----
        out = jnp.dot(fm.astype(cdt), wc_ref[...],
                      preferred_element_type=F32) + bc_ref[...]              # (Bt, n_out)
        o_ref[0] = out                                       # lane-dense (Bt, 512) store

    return kernel


# ---------------------------------------------------------------------------
# Host wrapper: fold BN / fuse convs / build pool matrices, one pallas_call
# ---------------------------------------------------------------------------
@functools.partial(jax.jit, static_argnames=("p1", "p2", "use_bf16"))
def eegnet_forward(x, sbj_idxs, params, *, p1, p2, use_bf16=False):
    """Fused EEGNet forward. sbj_idxs is accepted (as in the PyTorch forward)
    but unused by the module."""
    del sbj_idxs  # unused, exactly as in EEGNet.forward
    B, C, T = x.shape
    F1, _, _, k1 = params['w1'].shape
    DF1 = params['w2'].shape[0]
    D = DF1 // F1
    k2 = params['w3d'].shape[3]
    F2 = params['w3p'].shape[0]
    n_out, n_dim = params['wc'].shape
    # The reference/PyTorch AvgPool silently truncates; require exact tiling instead.
    assert T % p1 == 0 and (T // p1) % p2 == 0, "T must be divisible by p1*p2"
    T1 = T // p1
    T2 = T1 // p2
    assert n_dim == F2 * T2

    cdt = jnp.bfloat16 if use_bf16 else F32   # MXU operand dtype (f32 accumulation always)

    # --- fold eval-mode BatchNorm into the bias-free convs it follows (exact) ---
    def bn_fold(g, b, m, v):
        s = g / jnp.sqrt(v + BN_EPS)
        return s, b - m * s

    s1, h1 = bn_fold(params['g1'], params['b1'], params['m1'], params['v1'])
    s2, h2 = bn_fold(params['g2'], params['b2'], params['m2'], params['v2'])
    s3, h3 = bn_fold(params['g3'], params['b3'], params['m3'], params['v3'])

    w1f = params['w1'].reshape(F1, k1) * s1[:, None]          # (F1, k1), BN1 scale folded
    w2f = params['w2'].reshape(DF1, C) * s2[:, None]          # (DF1, C), BN2 scale folded
    w1r = jnp.repeat(w1f, D, axis=0)                          # per output channel gd
    # fused conv1⊗conv2 weight, K index = tau*C + c (matches kernel im2col order)
    W12 = (w1r[:, :, None] * w2f[:, None, :]).reshape(DF1, k1 * C)
    # BN1 shift folded through conv2 (exact): h2_total = h2 + h1[g] * sum_c w2f[gd, c]
    h2tot = h2 + jnp.repeat(h1, D) * jnp.sum(w2f, axis=1)     # (DF1,)

    w3df = params['w3d'].reshape(DF1, k2)
    w3pf = params['w3p'].reshape(F2, DF1) * s3[:, None]       # BN3 scale folded
    # fused depthwise⊗pointwise conv3 weight, K index = tau*DF1 + ch
    W3 = jnp.transpose(w3pf[:, :, None] * w3df[None, :, :], (0, 2, 1)).reshape(F2, k2 * DF1)

    wc_r = jnp.transpose(params['wc'])                        # (n_dim, n_out), rows f*T2+j
    bc_r = params['bc'].reshape(1, n_out)

    # conv1 'same' halo folded into a host-side pad of the input.
    PL1, PR1 = _same_pad(k1)
    Tp1 = T + k1 - 1
    xpad = jnp.pad(x, ((0, 0), (0, 0), (PL1, PR1)))

    # AvgPool(1, p1) as a matmul whose output already carries the zero halo for conv3's
    # 'same' depthwise conv; AvgPool(1, p2) as a plain matmul. (1/p is exact in bf16.)
    PL2, _ = _same_pad(k2)
    Tp2 = T1 + k2 - 1
    p1m = np.zeros((T, Tp2), np.float32)
    for j in range(T1):
        p1m[p1 * j:p1 * (j + 1), PL2 + j] = 1.0 / p1
    p2m = np.zeros((T1, T2), np.float32)
    for j in range(T2):
        p2m[p2 * j:p2 * (j + 1), j] = 1.0 / p2

    # --- batch tiling: >=2 grid steps when B>=2 (megacore on v7x), <=MAX_BT per step ---
    Bt = 1 if B <= 1 else min(MAX_BT, -(-B // 2))
    G = -(-B // Bt)
    Bp = G * Bt
    if Bp > B:
        xpad = jnp.pad(xpad, ((0, Bp - B), (0, 0), (0, 0)))
    x4 = xpad.reshape(G, Bt, C, Tp1).astype(cdt)

    kernel = _make_kernel(Bt=Bt, C=C, T=T, T1=T1, T2=T2, DF1=DF1, F2=F2,
                          k1=k1, k2=k2, n_out=n_out, cdt=cdt)

    def const(shape):
        zeros = (0,) * len(shape)
        return pl.BlockSpec(shape, lambda i, _z=zeros: _z)

    csize = 2 if use_bf16 else 4
    flops = Bp * 2 * (DF1 * (k1 * C) * T + DF1 * T * Tp2 + F2 * (k2 * DF1) * T1
                      + F2 * T1 * T2 + n_dim * n_out)
    transcendentals = Bp * (DF1 * T + F2 * T1)
    bytes_accessed = (Bp * C * Tp1 * csize + Bp * n_out * 4
                      + (DF1 * k1 * C + T * Tp2 + F2 * k2 * DF1 + T1 * T2
                         + n_dim * n_out) * csize
                      + (DF1 + F2 + n_out) * 4)

    out = pl.pallas_call(
        kernel,
        out_shape=jax.ShapeDtypeStruct((G, Bt, n_out), F32),
        grid=(G,),
        in_specs=[
            pl.BlockSpec((1, Bt, C, Tp1), lambda i: (i, 0, 0, 0)),  # batch tile of samples
            const((DF1, k1 * C)),   # fused conv1+conv2 weight (BN1/BN2 scales folded)
            const((DF1, 1)),        # BN2 shift + BN1 shift folded through conv2
            const((T, Tp2)),        # AvgPool1 matrix (+ conv3 'same' halo)
            const((F2, k2 * DF1)),  # fused conv3 depthwise+pointwise (BN3 scale folded)
            const((F2, 1)),         # BN3 shift
            const((T1, T2)),        # AvgPool2 matrix
            const((n_dim, n_out)),  # classifier weight, pre-transposed
            const((1, n_out)),      # classifier bias
        ],
        out_specs=pl.BlockSpec((1, Bt, n_out), lambda i: (i, 0, 0)),
        compiler_params=pltpu.CompilerParams(
            dimension_semantics=("parallel",)),
        cost_estimate=pl.CostEstimate(flops=flops,
                                      transcendentals=transcendentals,
                                      bytes_accessed=bytes_accessed),
    )(x4, W12.astype(cdt), h2tot.reshape(DF1, 1), jnp.asarray(p1m, cdt),
      W3.astype(cdt), h3.reshape(F2, 1), jnp.asarray(p2m, cdt),
      wc_r.astype(cdt), bc_r)

    return out.reshape(Bp, n_out)[:B]


# ---------------------------------------------------------------------------
# Deterministic parameter init (shapes follow the PyTorch module)
# ---------------------------------------------------------------------------
def init_params(key, *, C, T, F1, D, F2, k1, k2, p1, p2, n_out):
    DF1 = D * F1
    T2 = T // p1 // p2
    n_dim = F2 * T2
    ks = jax.random.split(key, 18)

    def nrm(k, shape, s):
        return s * jax.random.normal(k, shape, F32)

    def uni(k, shape, lo, hi):
        return jax.random.uniform(k, shape, F32, lo, hi)

    return dict(
        w1=nrm(ks[0], (F1, 1, 1, k1), 0.3),
        g1=1.0 + nrm(ks[1], (F1,), 0.1), b1=nrm(ks[2], (F1,), 0.1),
        m1=nrm(ks[3], (F1,), 0.1), v1=uni(ks[4], (F1,), 0.5, 1.5),
        w2=nrm(ks[5], (DF1, 1, C, 1), 0.3),
        g2=1.0 + nrm(ks[6], (DF1,), 0.1), b2=nrm(ks[7], (DF1,), 0.1),
        m2=nrm(ks[8], (DF1,), 0.1), v2=uni(ks[9], (DF1,), 0.5, 1.5),
        w3d=nrm(ks[10], (DF1, 1, 1, k2), 0.3),
        w3p=nrm(ks[11], (F2, DF1, 1, 1), 0.3),
        g3=1.0 + nrm(ks[12], (F2,), 0.1), b3=nrm(ks[13], (F2,), 0.1),
        m3=nrm(ks[14], (F2,), 0.1), v3=uni(ks[15], (F2,), 0.5, 1.5),
        wc=nrm(ks[16], (n_out, n_dim), 0.1),
        bc=nrm(ks[17], (n_out,), 0.1),
    )


# ---------------------------------------------------------------------------
# Pure-JAX reference (mirrors the PyTorch forward, eval mode)
# ---------------------------------------------------------------------------
def _ref_bn(x, g, b, m, v):
    sh = (1, -1, 1, 1)
    return ((x - m.reshape(sh)) / jnp.sqrt(v.reshape(sh) + BN_EPS)
            * g.reshape(sh) + b.reshape(sh))


def ref_forward(x, params, *, p1, p2):
    B, C, T = x.shape
    F1, _, _, k1 = params['w1'].shape
    DF1 = params['w2'].shape[0]
    F2 = params['w3p'].shape[0]
    k2 = params['w3d'].shape[3]
    hp = lax.Precision.HIGHEST

    PL1, PR1 = _same_pad(k1)
    y = lax.conv_general_dilated(
        x[:, None], params['w1'], (1, 1), [(0, 0), (PL1, PR1)],
        dimension_numbers=('NCHW', 'OIHW', 'NCHW'), precision=hp)
    y = _ref_bn(y, params['g1'], params['b1'], params['m1'], params['v1'])

    y = lax.conv_general_dilated(
        y, params['w2'], (1, 1), [(0, 0), (0, 0)],
        dimension_numbers=('NCHW', 'OIHW', 'NCHW'),
        feature_group_count=F1, precision=hp)
    y = jax.nn.elu(_ref_bn(y, params['g2'], params['b2'], params['m2'], params['v2']))
    T1 = T // p1
    y = y[..., :T1 * p1].reshape(B, DF1, 1, T1, p1).mean(-1)

    PL2, PR2 = _same_pad(k2)
    y = lax.conv_general_dilated(
        y, params['w3d'], (1, 1), [(0, 0), (PL2, PR2)],
        dimension_numbers=('NCHW', 'OIHW', 'NCHW'),
        feature_group_count=DF1, precision=hp)
    y = lax.conv_general_dilated(
        y, params['w3p'], (1, 1), [(0, 0), (0, 0)],
        dimension_numbers=('NCHW', 'OIHW', 'NCHW'), precision=hp)
    y = jax.nn.elu(_ref_bn(y, params['g3'], params['b3'], params['m3'], params['v3']))
    T2 = T1 // p2
    y = y[..., :T2 * p2].reshape(B, F2, 1, T2, p2).mean(-1)

    y = y.reshape(B, -1)
    return jnp.dot(y, params['wc'].T, precision=hp) + params['bc'][None, :]


if __name__ == "__main__":
    # Small EEGNet config: 16 ROI channels, 1 s @ 128 Hz window,
    # F1=8, D=2, F2=16, temporal kernels 16/8, pools 4/8 -> n_dim = 16*4 = 64.
    B, C, T = 2, 16, 128
    F1, D, F2 = 8, 2, 16
    k1, k2 = 16, 8
    p1, p2 = 4, 8
    n_out = 512

    key = jax.random.PRNGKey(0)
    kp, kx, ki = jax.random.split(key, 3)
    params = init_params(kp, C=C, T=T, F1=F1, D=D, F2=F2, k1=k1, k2=k2,
                         p1=p1, p2=p2, n_out=n_out)
    x = jax.random.normal(kx, (B, C, T), F32)
    sbj_idxs = jax.random.randint(ki, (B,), 0, 4)  # accepted but unused (as in PyTorch)

    # bf16 MXU operands on bf16-native MXUs (v6e / v7x), f32 elsewhere (review guidance).
    kind = jax.devices()[0].device_kind.lower()
    use_bf16 = ("v6" in kind) or ("v7" in kind)

    out = eegnet_forward(x, sbj_idxs, params, p1=p1, p2=p2, use_bf16=use_bf16)
    out = jax.block_until_ready(out)
    assert out.shape == (B, n_out), out.shape

    ref = ref_forward(x, params, p1=p1, p2=p2)
    np.testing.assert_allclose(np.asarray(out), np.asarray(ref),
                               rtol=2e-2, atol=2e-2)
    print("KERNEL_OK")
</pallas_src>

<mosaic_0001>
module attributes {stable_mosaic.version = 11 : i64} {
  func.func @kernel(%arg0: i32, %arg1: memref<1x1x16x143xf32, #tpu.memory_space<vmem>>, %arg2: memref<16x256xf32, #tpu.memory_space<vmem>>, %arg3: memref<16x1xf32, #tpu.memory_space<vmem>>, %arg4: memref<128x39xf32, #tpu.memory_space<vmem>>, %arg5: memref<16x128xf32, #tpu.memory_space<vmem>>, %arg6: memref<16x1xf32, #tpu.memory_space<vmem>>, %arg7: memref<32x4xf32, #tpu.memory_space<vmem>>, %arg8: memref<64x512xf32, #tpu.memory_space<vmem>>, %arg9: memref<1x512xf32, #tpu.memory_space<vmem>>, %arg10: memref<1x1x512xf32, #tpu.memory_space<vmem>>) attributes {dimension_semantics = [#tpu.dimension_semantics<parallel>], iteration_bounds = array<i64: 2>, scalar_prefetch = 0 : i64, scratch_operands = 0 : i64, tpu.core_type = #tpu.core_type<tc>, window_params = [{transform_indices = @transform_0, window_bounds = array<i64: 1, 1, 16, 143>}, {pipeline_mode = #tpu.pipeline_mode<synchronous>, transform_indices = @transform_1, window_bounds = array<i64: 16, 256>}, {pipeline_mode = #tpu.pipeline_mode<synchronous>, transform_indices = @transform_2, window_bounds = array<i64: 16, 1>}, {pipeline_mode = #tpu.pipeline_mode<synchronous>, transform_indices = @transform_3, window_bounds = array<i64: 128, 39>}, {pipeline_mode = #tpu.pipeline_mode<synchronous>, transform_indices = @transform_4, window_bounds = array<i64: 16, 128>}, {pipeline_mode = #tpu.pipeline_mode<synchronous>, transform_indices = @transform_5, window_bounds = array<i64: 16, 1>}, {pipeline_mode = #tpu.pipeline_mode<synchronous>, transform_indices = @transform_6, window_bounds = array<i64: 32, 4>}, {pipeline_mode = #tpu.pipeline_mode<synchronous>, transform_indices = @transform_7, window_bounds = array<i64: 64, 512>}, {pipeline_mode = #tpu.pipeline_mode<synchronous>, transform_indices = @transform_8, window_bounds = array<i64: 1, 512>}, {transform_indices = @transform_9, window_bounds = array<i64: 1, 1, 512>}]} {
    %c0 = arith.constant 0 : index
    %c0_0 = arith.constant 0 : index
    %c0_1 = arith.constant 0 : index
    %c0_2 = arith.constant 0 : index
    %0 = vector.load %arg1[%c0, %c0_0, %c0_1, %c0_2] : memref<1x1x16x143xf32, #tpu.memory_space<vmem>>, vector<1x1x16x143xf32>
    %1 = vector.shape_cast %0 : vector<1x1x16x143xf32> to vector<16x143xf32>
    %2 = vector.extract_strided_slice %1 {offsets = [0, 0], sizes = [16, 128], strides = [1, 1]} : vector<16x143xf32> to vector<16x128xf32>
    %3 = vector.extract_strided_slice %1 {offsets = [0, 1], sizes = [16, 128], strides = [1, 1]} : vector<16x143xf32> to vector<16x128xf32>
    %4 = vector.extract_strided_slice %1 {offsets = [0, 2], sizes = [16, 128], strides = [1, 1]} : vector<16x143xf32> to vector<16x128xf32>
    %5 = vector.extract_strided_slice %1 {offsets = [0, 3], sizes = [16, 128], strides = [1, 1]} : vector<16x143xf32> to vector<16x128xf32>
    %6 = vector.extract_strided_slice %1 {offsets = [0, 4], sizes = [16, 128], strides = [1, 1]} : vector<16x143xf32> to vector<16x128xf32>
    %7 = vector.extract_strided_slice %1 {offsets = [0, 5], sizes = [16, 128], strides = [1, 1]} : vector<16x143xf32> to vector<16x128xf32>
    %8 = vector.extract_strided_slice %1 {offsets = [0, 6], sizes = [16, 128], strides = [1, 1]} : vector<16x143xf32> to vector<16x128xf32>
    %9 = vector.extract_strided_slice %1 {offsets = [0, 7], sizes = [16, 128], strides = [1, 1]} : vector<16x143xf32> to vector<16x128xf32>
    %10 = vector.extract_strided_slice %1 {offsets = [0, 8], sizes = [16, 128], strides = [1, 1]} : vector<16x143xf32> to vector<16x128xf32>
    %11 = vector.extract_strided_slice %1 {offsets = [0, 9], sizes = [16, 128], strides = [1, 1]} : vector<16x143xf32> to vector<16x128xf32>
    %12 = vector.extract_strided_slice %1 {offsets = [0, 10], sizes = [16, 128], strides = [1, 1]} : vector<16x143xf32> to vector<16x128xf32>
    %13 = vector.extract_strided_slice %1 {offsets = [0, 11], sizes = [16, 128], strides = [1, 1]} : vector<16x143xf32> to vector<16x128xf32>
    %14 = vector.extract_strided_slice %1 {offsets = [0, 12], sizes = [16, 128], strides = [1, 1]} : vector<16x143xf32> to vector<16x128xf32>
    %15 = vector.extract_strided_slice %1 {offsets = [0, 13], sizes = [16, 128], strides = [1, 1]} : vector<16x143xf32> to vector<16x128xf32>
    %16 = vector.extract_strided_slice %1 {offsets = [0, 14], sizes = [16, 128], strides = [1, 1]} : vector<16x143xf32> to vector<16x128xf32>
    %17 = vector.extract_strided_slice %1 {offsets = [0, 15], sizes = [16, 128], strides = [1, 1]} : vector<16x143xf32> to vector<16x128xf32>
    %18 = tpu.concatenate %2, %3, %4, %5, %6, %7, %8, %9, %10, %11, %12, %13, %14, %15, %16, %17 in 0 : vector<16x128xf32>, vector<16x128xf32>, vector<16x128xf32>, vector<16x128xf32>, vector<16x128xf32>, vector<16x128xf32>, vector<16x128xf32>, vector<16x128xf32>, vector<16x128xf32>, vector<16x128xf32>, vector<16x128xf32>, vector<16x128xf32>, vector<16x128xf32>, vector<16x128xf32>, vector<16x128xf32>, vector<16x128xf32> -> vector<256x128xf32>
    %c0_3 = arith.constant 0 : index
    %c0_4 = arith.constant 0 : index
    %19 = vector.load %arg2[%c0_3, %c0_4] : memref<16x256xf32, #tpu.memory_space<vmem>>, vector<16x256xf32>
    %cst = arith.constant dense<0.000000e+00> : vector<16x128xf32>
    %20 = tpu.matmul %19, %18, %cst {dimension_numbers = #tpu.dot_dimension_numbers<[1], [0], [0], [1], [0, 0, 1, 1], [], []>} : vector<16x256xf32>, vector<256x128xf32>, vector<16x128xf32> -> vector<16x128xf32>
    %c0_5 = arith.constant 0 : index
    %c0_6 = arith.constant 0 : index
    %21 = vector.load %arg3[%c0_5, %c0_6] : memref<16x1xf32, #tpu.memory_space<vmem>>, vector<16x1xf32>
    %22 = vector.broadcast %21 : vector<16x1xf32> to vector<16x128xf32>
    %23 = arith.addf %20, %22 : vector<16x128xf32>
    %cst_7 = arith.constant 0.000000e+00 : f32
    %24 = vector.broadcast %cst_7 : f32 to vector<16x128xf32>
    %25 = arith.cmpf ogt, %23, %24 : vector<16x128xf32>
    %cst_8 = arith.constant 0.000000e+00 : f32
    %26 = vector.broadcast %cst_8 : f32 to vector<16x128xf32>
    %27 = arith.minimumf %23, %26 : vector<16x128xf32>
    %28 = math.exp %27 : vector<16x128xf32>
    %cst_9 = arith.constant 1.000000e+00 : f32
    %29 = vector.broadcast %cst_9 : f32 to vector<16x128xf32>
    %30 = arith.subf %28, %29 : vector<16x128xf32>
    %31 = arith.select %25, %23, %30 : vector<16x128xi1>, vector<16x128xf32>
    %c0_10 = arith.constant 0 : index
    %c0_11 = arith.constant 0 : index
    %32 = vector.load %arg4[%c0_10, %c0_11] : memref<128x39xf32, #tpu.memory_space<vmem>>, vector<128x39xf32>
    %cst_12 = arith.constant dense<0.000000e+00> : vector<16x39xf32>
    %33 = tpu.matmul %31, %32, %cst_12 {dimension_numbers = #tpu.dot_dimension_numbers<[1], [0], [0], [1], [0, 0, 1, 1], [], []>} : vector<16x128xf32>, vector<128x39xf32>, vector<16x39xf32> -> vector<16x39xf32>
    %34 = vector.extract_strided_slice %33 {offsets = [0, 0], sizes = [16, 32], strides = [1, 1]} : vector<16x39xf32> to vector<16x32xf32>
    %35 = vector.extract_strided_slice %33 {offsets = [0, 1], sizes = [16, 32], strides = [1, 1]} : vector<16x39xf32> to vector<16x32xf32>
    %36 = vector.extract_strided_slice %33 {offsets = [0, 2], sizes = [16, 32], strides = [1, 1]} : vector<16x39xf32> to vector<16x32xf32>
    %37 = vector.extract_strided_slice %33 {offsets = [0, 3], sizes = [16, 32], strides = [1, 1]} : vector<16x39xf32> to vector<16x32xf32>
    %38 = vector.extract_strided_slice %33 {offsets = [0, 4], sizes = [16, 32], strides = [1, 1]} : vector<16x39xf32> to vector<16x32xf32>
    %39 = vector.extract_strided_slice %33 {offsets = [0, 5], sizes = [16, 32], strides = [1, 1]} : vector<16x39xf32> to vector<16x32xf32>
    %40 = vector.extract_strided_slice %33 {offsets = [0, 6], sizes = [16, 32], strides = [1, 1]} : vector<16x39xf32> to vector<16x32xf32>
    %41 = vector.extract_strided_slice %33 {offsets = [0, 7], sizes = [16, 32], strides = [1, 1]} : vector<16x39xf32> to vector<16x32xf32>
    %42 = tpu.concatenate %34, %35, %36, %37, %38, %39, %40, %41 in 0 : vector<16x32xf32>, vector<16x32xf32>, vector<16x32xf32>, vector<16x32xf32>, vector<16x32xf32>, vector<16x32xf32>, vector<16x32xf32>, vector<16x32xf32> -> vector<128x32xf32>
    %c0_13 = arith.constant 0 : index
    %c0_14 = arith.constant 0 : index
    %43 = vector.load %arg5[%c0_13, %c0_14] : memref<16x128xf32, #tpu.memory_space<vmem>>, vector<16x128xf32>
    %cst_15 = arith.constant dense<0.000000e+00> : vector<16x32xf32>
    %44 = tpu.matmul %43, %42, %cst_15 {dimension_numbers = #tpu.dot_dimension_numbers<[1], [0], [0], [1], [0, 0, 1, 1], [], []>} : vector<16x128xf32>, vector<128x32xf32>, vector<16x32xf32> -> vector<16x32xf32>
    %c0_16 = arith.constant 0 : index
    %c0_17 = arith.constant 0 : index
    %45 = vector.load %arg6[%c0_16, %c0_17] : memref<16x1xf32, #tpu.memory_space<vmem>>, vector<16x1xf32>
    %46 = vector.broadcast %45 : vector<16x1xf32> to vector<16x32xf32>
    %47 = arith.addf %44, %46 : vector<16x32xf32>
    %cst_18 = arith.constant 0.000000e+00 : f32
    %48 = vector.broadcast %cst_18 : f32 to vector<16x32xf32>
    %49 = arith.cmpf ogt, %47, %48 : vector<16x32xf32>
    %cst_19 = arith.constant 0.000000e+00 : f32
    %50 = vector.broadcast %cst_19 : f32 to vector<16x32xf32>
    %51 = arith.minimumf %47, %50 : vector<16x32xf32>
    %52 = math.exp %51 : vector<16x32xf32>
    %cst_20 = arith.constant 1.000000e+00 : f32
    %53 = vector.broadcast %cst_20 : f32 to vector<16x32xf32>
    %54 = arith.subf %52, %53 : vector<16x32xf32>
    %55 = arith.select %49, %47, %54 : vector<16x32xi1>, vector<16x32xf32>
    %c0_21 = arith.constant 0 : index
    %c0_22 = arith.constant 0 : index
    %56 = vector.load %arg7[%c0_21, %c0_22] : memref<32x4xf32, #tpu.memory_space<vmem>>, vector<32x4xf32>
    %cst_23 = arith.constant dense<0.000000e+00> : vector<16x4xf32>
    %57 = tpu.matmul %55, %56, %cst_23 {dimension_numbers = #tpu.dot_dimension_numbers<[1], [0], [0], [1], [0, 0, 1, 1], [], []>} : vector<16x32xf32>, vector<32x4xf32>, vector<16x4xf32> -> vector<16x4xf32>
    %58 = vector.extract_strided_slice %57 {offsets = [0, 0], sizes = [1, 4], strides = [1, 1]} : vector<16x4xf32> to vector<1x4xf32>
    %59 = vector.extract_strided_slice %57 {offsets = [1, 0], sizes = [1, 4], strides = [1, 1]} : vector<16x4xf32> to vector<1x4xf32>
    %60 = vector.extract_strided_slice %57 {offsets = [2, 0], sizes = [1, 4], strides = [1, 1]} : vector<16x4xf32> to vector<1x4xf32>
    %61 = vector.extract_strided_slice %57 {offsets = [3, 0], sizes = [1, 4], strides = [1, 1]} : vector<16x4xf32> to vector<1x4xf32>
    %62 = vector.extract_strided_slice %57 {offsets = [4, 0], sizes = [1, 4], strides = [1, 1]} : vector<16x4xf32> to vector<1x4xf32>
    %63 = vector.extract_strided_slice %57 {offsets = [5, 0], sizes = [1, 4], strides = [1, 1]} : vector<16x4xf32> to vector<1x4xf32>
    %64 = vector.extract_strided_slice %57 {offsets = [6, 0], sizes = [1, 4], strides = [1, 1]} : vector<16x4xf32> to vector<1x4xf32>
    %65 = vector.extract_strided_slice %57 {offsets = [7, 0], sizes = [1, 4], strides = [1, 1]} : vector<16x4xf32> to vector<1x4xf32>
    %66 = vector.extract_strided_slice %57 {offsets = [8, 0], sizes = [1, 4], strides = [1, 1]} : vector<16x4xf32> to vector<1x4xf32>
    %67 = vector.extract_strided_slice %57 {offsets = [9, 0], sizes = [1, 4], strides = [1, 1]} : vector<16x4xf32> to vector<1x4xf32>
    %68 = vector.extract_strided_slice %57 {offsets = [10, 0], sizes = [1, 4], strides = [1, 1]} : vector<16x4xf32> to vector<1x4xf32>
    %69 = vector.extract_strided_slice %57 {offsets = [11, 0], sizes = [1, 4], strides = [1, 1]} : vector<16x4xf32> to vector<1x4xf32>
    %70 = vector.extract_strided_slice %57 {offsets = [12, 0], sizes = [1, 4], strides = [1, 1]} : vector<16x4xf32> to vector<1x4xf32>
    %71 = vector.extract_strided_slice %57 {offsets = [13, 0], sizes = [1, 4], strides = [1, 1]} : vector<16x4xf32> to vector<1x4xf32>
    %72 = vector.extract_strided_slice %57 {offsets = [14, 0], sizes = [1, 4], strides = [1, 1]} : vector<16x4xf32> to vector<1x4xf32>
    %73 = vector.extract_strided_slice %57 {offsets = [15, 0], sizes = [1, 4], strides = [1, 1]} : vector<16x4xf32> to vector<1x4xf32>
    %74 = tpu.concatenate %58, %59, %60, %61, %62, %63, %64, %65, %66, %67, %68, %69, %70, %71, %72, %73 in 1 : vector<1x4xf32>, vector<1x4xf32>, vector<1x4xf32>, vector<1x4xf32>, vector<1x4xf32>, vector<1x4xf32>, vector<1x4xf32>, vector<1x4xf32>, vector<1x4xf32>, vector<1x4xf32>, vector<1x4xf32>, vector<1x4xf32>, vector<1x4xf32>, vector<1x4xf32>, vector<1x4xf32>, vector<1x4xf32> -> vector<1x64xf32>
    %c0_24 = arith.constant 0 : index
    %c0_25 = arith.constant 0 : index
    %75 = vector.load %arg8[%c0_24, %c0_25] : memref<64x512xf32, #tpu.memory_space<vmem>>, vector<64x512xf32>
    %cst_26 = arith.constant dense<0.000000e+00> : vector<1x512xf32>
    %76 = tpu.matmul %74, %75, %cst_26 {dimension_numbers = #tpu.dot_dimension_numbers<[1], [0], [0], [1], [0, 0, 1, 1], [], []>} : vector<1x64xf32>, vector<64x512xf32>, vector<1x512xf32> -> vector<1x512xf32>
    %c0_27 = arith.constant 0 : index
    %c0_28 = arith.constant 0 : index
    %77 = vector.load %arg9[%c0_27, %c0_28] : memref<1x512xf32, #tpu.memory_space<vmem>>, vector<1x512xf32>
    %78 = arith.addf %76, %77 : vector<1x512xf32>
    %c0_29 = arith.constant 0 : index
    %c0_30 = arith.constant 0 : index
    %c0_31 = arith.constant 0 : index
    %79 = vector.load %arg10[%c0_29, %c0_30, %c0_31] : memref<1x1x512xf32, #tpu.memory_space<vmem>>, vector<1x1x512xf32>
    %80 = vector.shape_cast %79 : vector<1x1x512xf32> to vector<1x512xf32>
    %81 = vector.shape_cast %78 : vector<1x512xf32> to vector<1x1x512xf32>
    tpu.vector_store %arg10[%c0_29, %c0_30, %c0_31], %81 {strides = array<i32>} : memref<1x1x512xf32, #tpu.memory_space<vmem>>, vector<1x1x512xf32>,
    return
  }
  func.func @transform_0(%arg0: i32) -> (i32, i32, i32, i32) {
    %c0_i32 = arith.constant 0 : i32
    %c0_i32_0 = arith.constant 0 : i32
    %c0_i32_1 = arith.constant 0 : i32
    %c0_i32_2 = arith.constant 0 : i32
    return %arg0, %c0_i32, %c0_i32_0, %c0_i32_1 : i32, i32, i32, i32
  }
  func.func @transform_1(%arg0: i32) -> (i32, i32) {
    %c0_i32 = arith.constant 0 : i32
    %c0_i32_0 = arith.constant 0 : i32
    %c0_i32_1 = arith.constant 0 : i32
    return %c0_i32, %c0_i32_0 : i32, i32
  }
  func.func @transform_2(%arg0: i32) -> (i32, i32) {
    %c0_i32 = arith.constant 0 : i32
    %c0_i32_0 = arith.constant 0 : i32
    %c0_i32_1 = arith.constant 0 : i32
    return %c0_i32, %c0_i32_0 : i32, i32
  }
  func.func @transform_3(%arg0: i32) -> (i32, i32) {
    %c0_i32 = arith.constant 0 : i32
    %c0_i32_0 = arith.constant 0 : i32
    %c0_i32_1 = arith.constant 0 : i32
    return %c0_i32, %c0_i32_0 : i32, i32
  }
  func.func @transform_4(%arg0: i32) -> (i32, i32) {
    %c0_i32 = arith.constant 0 : i32
    %c0_i32_0 = arith.constant 0 : i32
    %c0_i32_1 = arith.constant 0 : i32
    return %c0_i32, %c0_i32_0 : i32, i32
  }
  func.func @transform_5(%arg0: i32) -> (i32, i32) {
    %c0_i32 = arith.constant 0 : i32
    %c0_i32_0 = arith.constant 0 : i32
    %c0_i32_1 = arith.constant 0 : i32
    return %c0_i32, %c0_i32_0 : i32, i32
  }
  func.func @transform_6(%arg0: i32) -> (i32, i32) {
    %c0_i32 = arith.constant 0 : i32
    %c0_i32_0 = arith.constant 0 : i32
    %c0_i32_1 = arith.constant 0 : i32
    return %c0_i32, %c0_i32_0 : i32, i32
  }
  func.func @transform_7(%arg0: i32) -> (i32, i32) {
    %c0_i32 = arith.constant 0 : i32
    %c0_i32_0 = arith.constant 0 : i32
    %c0_i32_1 = arith.constant 0 : i32
    return %c0_i32, %c0_i32_0 : i32, i32
  }
  func.func @transform_8(%arg0: i32) -> (i32, i32) {
    %c0_i32 = arith.constant 0 : i32
    %c0_i32_0 = arith.constant 0 : i32
    %c0_i32_1 = arith.constant 0 : i32
    return %c0_i32, %c0_i32_0 : i32, i32
  }
  func.func @transform_9(%arg0: i32) -> (i32, i32, i32) {
    %c0_i32 = arith.constant 0 : i32
    %c0_i32_0 = arith.constant 0 : i32
    %c0_i32_1 = arith.constant 0 : i32
    return %arg0, %c0_i32, %c0_i32_0 : i32, i32, i32
  }
}

</mosaic_0001>

<llo_original>
// kernel: eegnet_forward.1
$region0: #{eegnet_forward.1}
  #allocation0 [shape = 'u32[]', space=smem, size = 0x4, offset = 0x4, fixed_abs, tag = 'smem constant byte address 0x4 - core index']
  #allocation1 [shape = 'u32[144,128]{1,0:T(1,128)}', space=vmem, size = 0x12000, scoped, tag = 'internal scratch']
  %s0 = inlined_call_operand.vmem [shape: f32[2,1,16,143], index: 0, kind: input, shape index: {}]
  %s1 = inlined_call_operand.vmem [shape: f32[16,256], index: 1, kind: input, shape index: {}]
  %s2 = inlined_call_operand.vmem [shape: f32[16,1], index: 2, kind: input, shape index: {}]
  %s3 = inlined_call_operand.vmem [shape: f32[128,39], index: 3, kind: input, shape index: {}]
  %s4 = inlined_call_operand.vmem [shape: f32[16,128], index: 4, kind: input, shape index: {}]
  %s5 = inlined_call_operand.vmem [shape: f32[16,1], index: 5, kind: input, shape index: {}]
  %s6 = inlined_call_operand.vmem [shape: f32[32,4], index: 6, kind: input, shape index: {}]
  %s7 = inlined_call_operand.vmem [shape: f32[64,512], index: 7, kind: input, shape index: {}]
  %s8 = inlined_call_operand.vmem [shape: f32[1,512], index: 8, kind: input, shape index: {}]
  %s9 = inlined_call_operand.vmem [shape: f32[2,1,512], index: 9, kind: output, shape index: {}]
  %s10 = sld [smem:[#allocation0]]
  $region69: #{eegnet_forward.1} parent=0
    _
  %s12 = ssub.s32 1, %s10
  %s13 = scalar_select 0, %s12, %s10
  loop: start=0, step=1, limit=4
  $region2: #{eegnet_forward.1} parent=0 // loop_pre_header
    _
  $region3: #{eegnet_forward.1} parent=0 // loop_header
    %s15 = sphi 0, %s19
    %p16 = scmp.ge.s32.totalorder %s15, 4
    %s25 = sphi 0, %s27
    %s28 = sphi 0, %s25
    %s29 = sphi 0, %s28
    %s45 = sphi 0, %s29
    %s49 = sphi 0, %s49
    %s51 = sphi 0, %s49
    %s52 = sphi 0, %s51
    %s66 = sphi 0, %s52
    %s70 = sphi 0, %s70
    %s72 = sphi 0, %s70
    %s73 = sphi 0, %s72
    %s87 = sphi 0, %s73
    %s91 = sphi 0, %s91
    %s93 = sphi 0, %s91
    %s94 = sphi 0, %s93
    %s108 = sphi 0, %s94
    %s112 = sphi 0, %s112
    %s114 = sphi 0, %s112
    %s115 = sphi 0, %s114
    %s129 = sphi 0, %s115
    %s133 = sphi 0, %s133
    %s135 = sphi 0, %s133
    %s136 = sphi 0, %s135
    %s150 = sphi 0, %s136
    %s154 = sphi 0, %s154
    %s156 = sphi 0, %s154
    %s157 = sphi 0, %s156
    %s171 = sphi 0, %s157
    %s175 = sphi 0, %s175
    %s177 = sphi 0, %s175
    %s178 = sphi 0, %s177
    %s192 = sphi 0, %s178
    %s196 = sphi 0, %s196
    %s198 = sphi 0, %s196
    %s199 = sphi 0, %s198
    %s213 = sphi 0, %s199
    %s219 = sphi 0, %s221
    %s222 = sphi 0, %s219
    %s223 = sphi 0, %s222
    %s239 = sphi 0, %s223
  $region4: #{eegnet_forward.1} parent=0 // loop_header_branch
    %18 = sbr.rel (%p16) target = $region8
  $region5: #{eegnet_forward.1} parent=0 // loop_body
    %s20 = ssub.s32 %s15, 1
    %s21 = ssub.s32 %s15, 2
    %s22 = sadd.s32 %s15, 1
    %s23 = ssub.s32 %s15, %s22
    %p24 = scmp.eq.s32.totalorder %s23, 0
    %s26 = sadd.s32 %s25, 1
    %s27 = scalar_select %p24, %s25, %s26
    %p30 = pneg %p24
    %p31 = scmp.eq.s32.totalorder %s15, 1
    %p32 = por %p30, %p31
    %p33 = scmp.ne.s32.totalorder %s25, %s28
    %p34 = scmp.eq.s32.totalorder %s15, 0
    %p35 = por %p33, %p34
    %p36 = scmp.ne.s32.totalorder %s25, %s28
    %p37 = scmp.eq.s32.totalorder %s20, 1
    %p38 = por %p36, %p37
    %p39 = scmp.ne.s32.totalorder %s28, %s29
    %p40 = scmp.eq.s32.totalorder %s20, 0
    %p41 = por %p39, %p40
    %p42 = scmp.ne.s32.totalorder %s28, %s29
    %p43 = scmp.eq.s32.totalorder %s21, 1
    %p44 = por %p42, %p43
    %p46 = scmp.ne.s32.totalorder %s29, %s45
    %p47 = scmp.eq.s32.totalorder %s21, 0
    %p48 = por %p46, %p47
    %s50 = sadd.s32 %s49, 1
    %p53 = scmp.eq.s32.totalorder %s15, 1
    %p54 = scmp.ne.s32.totalorder %s49, %s51
    %p55 = scmp.eq.s32.totalorder %s15, 0
    %p56 = por %p54, %p55
    %p57 = scmp.ne.s32.totalorder %s49, %s51
    %p58 = scmp.eq.s32.totalorder %s20, 1
    %p59 = por %p57, %p58
    %p60 = scmp.ne.s32.totalorder %s51, %s52
    %p61 = scmp.eq.s32.totalorder %s20, 0
    %p62 = por %p60, %p61
    %p63 = scmp.ne.s32.totalorder %s51, %s52
    %p64 = scmp.eq.s32.totalorder %s21, 1
    %p65 = por %p63, %p64
    %p67 = scmp.ne.s32.totalorder %s52, %s66
    %p68 = scmp.eq.s32.totalorder %s21, 0
    %p69 = por %p67, %p68
    %s71 = sadd.s32 %s70, 1
    %p74 = scmp.eq.s32.totalorder %s15, 1
    %p75 = scmp.ne.s32.totalorder %s70, %s72
    %p76 = scmp.eq.s32.totalorder %s15, 0
    %p77 = por %p75, %p76
    %p78 = scmp.ne.s32.totalorder %s70, %s72
    %p79 = scmp.eq.s32.totalorder %s20, 1
    %p80 = por %p78, %p79
    %p81 = scmp.ne.s32.totalorder %s72, %s73
    %p82 = scmp.eq.s32.totalorder %s20, 0
    %p83 = por %p81, %p82
    %p84 = scmp.ne.s32.totalorder %s72, %s73
    %p85 = scmp.eq.s32.totalorder %s21, 1
    %p86 = por %p84, %p85
    %p88 = scmp.ne.s32.totalorder %s73, %s87
    %p89 = scmp.eq.s32.totalorder %s21, 0
    %p90 = por %p88, %p89
    %s92 = sadd.s32 %s91, 1
    %p95 = scmp.eq.s32.totalorder %s15, 1
    %p96 = scmp.ne.s32.totalorder %s91, %s93
    %p97 = scmp.eq.s32.totalorder %s15, 0
    %p98 = por %p96, %p97
    %p99 = scmp.ne.s32.totalorder %s91, %s93
    %p100 = scmp.eq.s32.totalorder %s20, 1
    %p101 = por %p99, %p100
    %p102 = scmp.ne.s32.totalorder %s93, %s94
    %p103 = scmp.eq.s32.totalorder %s20, 0
    %p104 = por %p102, %p103
    %p105 = scmp.ne.s32.totalorder %s93, %s94
    %p106 = scmp.eq.s32.totalorder %s21, 1
    %p107 = por %p105, %p106
    %p109 = scmp.ne.s32.totalorder %s94, %s108
    %p110 = scmp.eq.s32.totalorder %s21, 0
    %p111 = por %p109, %p110
    %s113 = sadd.s32 %s112, 1
    %p116 = scmp.eq.s32.totalorder %s15, 1
    %p117 = scmp.ne.s32.totalorder %s112, %s114
    %p118 = scmp.eq.s32.totalorder %s15, 0
    %p119 = por %p117, %p118
    %p120 = scmp.ne.s32.totalorder %s112, %s114
    %p121 = scmp.eq.s32.totalorder %s20, 1
    %p122 = por %p120, %p121
    %p123 = scmp.ne.s32.totalorder %s114, %s115
    %p124 = scmp.eq.s32.totalorder %s20, 0
    %p125 = por %p123, %p124
    %p126 = scmp.ne.s32.totalorder %s114, %s115
    %p127 = scmp.eq.s32.totalorder %s21, 1
    %p128 = por %p126, %p127
    %p130 = scmp.ne.s32.totalorder %s115, %s129
    %p131 = scmp.eq.s32.totalorder %s21, 0
    %p132 = por %p130, %p131
    %s134 = sadd.s32 %s133, 1
    %p137 = scmp.eq.s32.totalorder %s15, 1
    %p138 = scmp.ne.s32.totalorder %s133, %s135
    %p139 = scmp.eq.s32.totalorder %s15, 0
    %p140 = por %p138, %p139
    %p141 = scmp.ne.s32.totalorder %s133, %s135
    %p142 = scmp.eq.s32.totalorder %s20, 1
    %p143 = por %p141, %p142
    %p144 = scmp.ne.s32.totalorder %s135, %s136
    %p145 = scmp.eq.s32.totalorder %s20, 0
    %p146 = por %p144, %p145
    %p147 = scmp.ne.s32.totalorder %s135, %s136
    %p148 = scmp.eq.s32.totalorder %s21, 1
    %p149 = por %p147, %p148
    %p151 = scmp.ne.s32.totalorder %s136, %s150
    %p152 = scmp.eq.s32.totalorder %s21, 0
    %p153 = por %p151, %p152
    %s155 = sadd.s32 %s154, 1
    %p158 = scmp.eq.s32.totalorder %s15, 1
    %p159 = scmp.ne.s32.totalorder %s154, %s156
    %p160 = scmp.eq.s32.totalorder %s15, 0
    %p161 = por %p159, %p160
    %p162 = scmp.ne.s32.totalorder %s154, %s156
    %p163 = scmp.eq.s32.totalorder %s20, 1
    %p164 = por %p162, %p163
    %p165 = scmp.ne.s32.totalorder %s156, %s157
    %p166 = scmp.eq.s32.totalorder %s20, 0
    %p167 = por %p165, %p166
    %p168 = scmp.ne.s32.totalorder %s156, %s157
    %p169 = scmp.eq.s32.totalorder %s21, 1
    %p170 = por %p168, %p169
    %p172 = scmp.ne.s32.totalorder %s157, %s171
    %p173 = scmp.eq.s32.totalorder %s21, 0
    %p174 = por %p172, %p173
    %s176 = sadd.s32 %s175, 1
    %p179 = scmp.eq.s32.totalorder %s15, 1
    %p180 = scmp.ne.s32.totalorder %s175, %s177
    %p181 = scmp.eq.s32.totalorder %s15, 0
    %p182 = por %p180, %p181
    %p183 = scmp.ne.s32.totalorder %s175, %s177
    %p184 = scmp.eq.s32.totalorder %s20, 1
    %p185 = por %p183, %p184
    %p186 = scmp.ne.s32.totalorder %s177, %s178
    %p187 = scmp.eq.s32.totalorder %s20, 0
    %p188 = por %p186, %p187
    %p189 = scmp.ne.s32.totalorder %s177, %s178
    %p190 = scmp.eq.s32.totalorder %s21, 1
    %p191 = por %p189, %p190
    %p193 = scmp.ne.s32.totalorder %s178, %s192
    %p194 = scmp.eq.s32.totalorder %s21, 0
    %p195 = por %p193, %p194
    %s197 = sadd.s32 %s196, 1
    %p200 = scmp.eq.s32.totalorder %s15, 1
    %p201 = scmp.ne.s32.totalorder %s196, %s198
    %p202 = scmp.eq.s32.totalorder %s15, 0
    %p203 = por %p201, %p202
    %p204 = scmp.ne.s32.totalorder %s196, %s198
    %p205 = scmp.eq.s32.totalorder %s20, 1
    %p206 = por %p204, %p205
    %p207 = scmp.ne.s32.totalorder %s198, %s199
    %p208 = scmp.eq.s32.totalorder %s20, 0
    %p209 = por %p207, %p208
    %p210 = scmp.ne.s32.totalorder %s198, %s199
    %p211 = scmp.eq.s32.totalorder %s21, 1
    %p212 = por %p210, %p211
    %p214 = scmp.ne.s32.totalorder %s199, %s213
    %p215 = scmp.eq.s32.totalorder %s21, 0
    %p216 = por %p214, %p215
    %s217 = ssub.s32 %s15, %s22
    %p218 = scmp.eq.s32.totalorder %s217, 0
    %s220 = sadd.s32 %s219, 1
    %s221 = scalar_select %p218, %s219, %s220
    %p224 = pneg %p218
    %p225 = scmp.eq.s32.totalorder %s15, 1
    %p226 = por %p224, %p225
    %p227 = scmp.ne.s32.totalorder %s219, %s222
    %p228 = scmp.eq.s32.totalorder %s15, 0
    %p229 = por %p227, %p228
    %p230 = scmp.ne.s32.totalorder %s219, %s222
    %p231 = scmp.eq.s32.totalorder %s20, 1
    %p232 = por %p230, %p231
    %p233 = scmp.ne.s32.totalorder %s222, %s223
    %p234 = scmp.eq.s32.totalorder %s20, 0
    %p235 = por %p233, %p234
    %p236 = scmp.ne.s32.totalorder %s222, %s223
    %p237 = scmp.eq.s32.totalorder %s21, 1
    %p238 = por %p236, %p237
    %p240 = scmp.ne.s32.totalorder %s223, %s239
    %p241 = scmp.eq.s32.totalorder %s21, 0
    %p242 = por %p240, %p241
    %p243 = scmp.le.s32.totalorder 1, %s15
    %p244 = scmp.lt.s32.totalorder %s15, 3
    %p245 = pnand %p243, %p244
    %p246 = pneg %p245
    // Predicated region
    $region9: #{eegnet_forward.1} parent=5 // pred_check
      _
    $region10: #{eegnet_forward.1} parent=5 // pred_check_branch
      %248 = sbr.rel (%p245) target = $region12
    $region11: #{eegnet_forward.1} parent=5 // pred_region
      %s249 = ssub.s32 %s15, 1
      // Predicated region
      $region13: #{eegnet_forward.1} parent=11 // pred_check
        %p250 = pneg %p62
      $region14: #{eegnet_forward.1} parent=11 // pred_check_branch
        %252 = sbr.rel (%p250) target = $region16
      $region15: #{eegnet_forward.1} parent=11 // pred_region
        _
      $region16: #{eegnet_forward.1} parent=11 // pred_fallthru
        _
      // Predicated region
      $region17: #{eegnet_forward.1} parent=11 // pred_check
        %p253 = pneg %p83
      $region18: #{eegnet_forward.1} parent=11 // pred_check_branch
        %255 = sbr.rel (%p253) target = $region20
      $region19: #{eegnet_forward.1} parent=11 // pred_region
        _
      $region20: #{eegnet_forward.1} parent=11 // pred_fallthru
        _
      // Predicated region
      $region21: #{eegnet_forward.1} parent=11 // pred_check
        %p256 = pneg %p104
      $region22: #{eegnet_forward.1} parent=11 // pred_check_branch
        %258 = sbr.rel (%p256) target = $region24
      $region23: #{eegnet_forward.1} parent=11 // pred_region
        _
      $region24: #{eegnet_forward.1} parent=11 // pred_fallthru
        _
      // Predicated region
      $region25: #{eegnet_forward.1} parent=11 // pred_check
        %p259 = pneg %p125
      $region26: #{eegnet_forward.1} parent=11 // pred_check_branch
        %261 = sbr.rel (%p259) target = $region28
      $region27: #{eegnet_forward.1} parent=11 // pred_region
        _
      $region28: #{eegnet_forward.1} parent=11 // pred_fallthru
        _
      // Predicated region
      $region29: #{eegnet_forward.1} parent=11 // pred_check
        %p262 = pneg %p146
      $region30: #{eegnet_forward.1} parent=11 // pred_check_branch
        %264 = sbr.rel (%p262) target = $region32
      $region31: #{eegnet_forward.1} parent=11 // pred_region
        _
      $region32: #{eegnet_forward.1} parent=11 // pred_fallthru
        _
      // Predicated region
      $region33: #{eegnet_forward.1} parent=11 // pred_check
        %p265 = pneg %p167
      $region34: #{eegnet_forward.1} parent=11 // pred_check_branch
        %267 = sbr.rel (%p265) target = $region36
      $region35: #{eegnet_forward.1} parent=11 // pred_region
        _
      $region36: #{eegnet_forward.1} parent=11 // pred_fallthru
        _
      // Predicated region
      $region37: #{eegnet_forward.1} parent=11 // pred_check
        %p268 = pneg %p188
      $region38: #{eegnet_forward.1} parent=11 // pred_check_branch
        %270 = sbr.rel (%p268) target = $region40
      $region39: #{eegnet_forward.1} parent=11 // pred_region
        _
      $region40: #{eegnet_forward.1} parent=11 // pred_fallthru
        _
      // Predicated region
      $region41: #{eegnet_forward.1} parent=11 // pred_check
        %p271 = pneg %p209
      $region42: #{eegnet_forward.1} parent=11 // pred_check_branch
        %273 = sbr.rel (%p271) target = $region44
      $region43: #{eegnet_forward.1} parent=11 // pred_region
        _
      $region44: #{eegnet_forward.1} parent=11 // pred_fallthru
        _
    $region12: #{eegnet_forward.1} parent=5 // pred_fallthru
      _
    %p274 = scmp.lt.s32.totalorder %s15, 2
    // Predicated region
    $region45: #{eegnet_forward.1} parent=5 // pred_check
      %p275 = pneg %p274
    $region46: #{eegnet_forward.1} parent=5 // pred_check_branch
      %277 = sbr.rel (%p275) target = $region48
    $region47: #{eegnet_forward.1} parent=5 // pred_region
      // Predicated region
      $region49: #{eegnet_forward.1} parent=47 // pred_check
        %p278 = pneg %p35
      $region50: #{eegnet_forward.1} parent=47 // pred_check_branch
        %280 = sbr.rel (%p278) target = $region52
      $region51: #{eegnet_forward.1} parent=47 // pred_region
        %p281 = scmp.lt.s32.totalorder %s15, 1
        %s282 = scalar_select %p281, %s15, 1
        %s283 = smul.addr %s282, 4
        %s284 = smul.addr %s283, 8
        %s285 = scalar_lea.vmem %s0, %s284
      $region52: #{eegnet_forward.1} parent=47 // pred_fallthru
        _
    $region48: #{eegnet_forward.1} parent=5 // pred_fallthru
      _
    %p286 = scmp.le.s32.totalorder 1, %s15
    %p287 = scmp.lt.s32.totalorder %s15, 3
    %p288 = pnand %p286, %p287
    %p289 = pneg %p288
    // Predicated region
    $region53: #{eegnet_forward.1} parent=5 // pred_check
      _
    $region54: #{eegnet_forward.1} parent=5 // pred_check_branch
      %291 = sbr.rel (%p288) target = $region56
    $region55: #{eegnet_forward.1} parent=5 // pred_region
      %s292 = ssub.s32 %s15, 1
      %p293 = scmp.lt.s32.totalorder %s20, 1
      %s294 = scalar_select %p293, %s20, 1
      %s295 = smul.addr %s294, 4
      %s296 = smul.addr %s295, 8
      %s297 = scalar_lea.vmem %s0, %s296
      %p298 = pneg %p41
      %p299 = pneg %p38
      %p300 = pneg %p62
      %p301 = pneg %p59
      %p302 = pneg %p83
      %p303 = pneg %p80
      %p304 = pneg %p104
      %p305 = pneg %p101
      %p306 = pneg %p125
      %p307 = pneg %p122
      %p308 = pneg %p146
      %p309 = pneg %p143
      %p310 = pneg %p167
      %p311 = pneg %p164
      %p312 = pneg %p188
      %p313 = pneg %p185
      %p314 = pneg %p209
      %p315 = pneg %p206
      %p316 = pneg %p235
      %p317 = pneg %p232
      %p318 = scmp.lt.s32.totalorder %s20, 1
      %s319 = scalar_select %p318, %s20, 1
      %s320 = smul.addr %s319, 4
      %s321 = scalar_lea.vmem %s9, %s320
      %p322 = scmp.lt.s32.totalorder %s20, 1
      %s323 = scalar_select %p322, %s20, 1
      %s324 = smul.addr %s323, 4
      %s325 = smul.addr %s324, 8
      %s326 = scalar_lea.vmem %s0, %s325
      %p327 = scmp.lt.s32.totalorder %s20, 1
      %s328 = scalar_select %p327, %s20, 1
      %s329 = smul.addr %s328, 4
      %s330 = scalar_lea.vmem %s9, %s329
      %v331 = vld [vmem:[%s326] sm:$0xff]
      %v332 = vld [vmem:[%s326 + $0x8] sm:$0xff]
      %v333 = vld [vmem:[%s326 + $0x10] sm:$0xff]
      %v334 = vld [vmem:[%s326 + $0x18] sm:$0xff]
      %339 = vrot.lane.b32.xlu0 %v331, 127
      %v340 = vpop.permute.xlu0 %339
      %341 = vrot.lane.b32.xlu0 %v332, 127
      %v342 = vpop.permute.xlu0 %341
      %343 = vrot.lane.b32.xlu0 %v333, 127
      %v344 = vpop.permute.xlu0 %343
      %345 = vrot.lane.b32.xlu0 %v334, 127
      %v346 = vpop.permute.xlu0 %345
      %vm347 = vcmask 1039360
      %v348 = vsel %vm347, %v340, %v342
      %v349 = vsel %vm347, %v344, %v346
      %352 = vrot.lane.b32.xlu0 %v331, 126
      %v353 = vpop.permute.xlu0 %352
      %354 = vrot.lane.b32.xlu0 %v332, 126
      %v355 = vpop.permute.xlu0 %354
      %356 = vrot.lane.b32.xlu0 %v333, 126
      %v357 = vpop.permute.xlu0 %356
      %358 = vrot.lane.b32.xlu0 %v334, 126
      %v359 = vpop.permute.xlu0 %358
      %vm360 = vcmask 1031168
      %v361 = vsel %vm360, %v353, %v355
      %v362 = vsel %vm360, %v357, %v359
      %365 = vrot.lane.b32.xlu0 %v331, 125
      %v366 = vpop.permute.xlu0 %365
      %367 = vrot.lane.b32.xlu0 %v332, 125
      %v368 = vpop.permute.xlu0 %367
      %369 = vrot.lane.b32.xlu0 %v333, 125
      %v370 = vpop.permute.xlu0 %369
      %371 = vrot.lane.b32.xlu0 %v334, 125
      %v372 = vpop.permute.xlu0 %371
      %vm373 = vcmask 1022976
      %v374 = vsel %vm373, %v366, %v368
      %v375 = vsel %vm373, %v370, %v372
      %378 = vrot.lane.b32.xlu0 %v331, 124
      %v379 = vpop.permute.xlu0 %378
      %380 = vrot.lane.b32.xlu0 %v332, 124
      %v381 = vpop.permute.xlu0 %380
      %382 = vrot.lane.b32.xlu0 %v333, 124
      %v383 = vpop.permute.xlu0 %382
      %384 = vrot.lane.b32.xlu0 %v334, 124
      %v385 = vpop.permute.xlu0 %384
      %vm386 = vcmask 1014784
      %v387 = vsel %vm386, %v379, %v381
      %v388 = vsel %vm386, %v383, %v385
      %391 = vrot.lane.b32.xlu0 %v331, 123
      %v392 = vpop.permute.xlu0 %391
      %393 = vrot.lane.b32.xlu0 %v332, 123
      %v394 = vpop.permute.xlu0 %393
      %395 = vrot.lane.b32.xlu0 %v333, 123
      %v396 = vpop.permute.xlu0 %395
      %397 = vrot.lane.b32.xlu0 %v334, 123
      %v398 = vpop.permute.xlu0 %397
      %vm399 = vcmask 1006592
      %v400 = vsel %vm399, %v392, %v394
      %v401 = vsel %vm399, %v396, %v398
      %404 = vrot.lane.b32.xlu0 %v331, 122
      %v405 = vpop.permute.xlu0 %404
      %406 = vrot.lane.b32.xlu0 %v332, 122
      %v407 = vpop.permute.xlu0 %406
      %408 = vrot.lane.b32.xlu0 %v333, 122
      %v409 = vpop.permute.xlu0 %408
      %410 = vrot.lane.b32.xlu0 %v334, 122
      %v411 = vpop.permute.xlu0 %410
      %vm412 = vcmask 998400
      %v413 = vsel %vm412, %v405, %v407
      %v414 = vsel %vm412, %v409, %v411
      %417 = vrot.lane.b32.xlu0 %v331, 121
      %v418 = vpop.permute.xlu0 %417
      %419 = vrot.lane.b32.xlu0 %v332, 121
      %v420 = vpop.permute.xlu0 %419
      %421 = vrot.lane.b32.xlu0 %v333, 121
      %v422 = vpop.permute.xlu0 %421
      %423 = vrot.lane.b32.xlu0 %v334, 121
      %v424 = vpop.permute.xlu0 %423
      %vm425 = vcmask 990208
      %v426 = vsel %vm425, %v418, %v420
      %v427 = vsel %vm425, %v422, %v424
      %430 = vrot.lane.b32.xlu0 %v331, 120
      %v431 = vpop.permute.xlu0 %430
      %432 = vrot.lane.b32.xlu0 %v332, 120
      %v433 = vpop.permute.xlu0 %432
      %434 = vrot.lane.b32.xlu0 %v333, 120
      %v435 = vpop.permute.xlu0 %434
      %436 = vrot.lane.b32.xlu0 %v334, 120
      %v437 = vpop.permute.xlu0 %436
      %vm438 = vcmask 982016
      %v439 = vsel %vm438, %v431, %v433
      %v440 = vsel %vm438, %v435, %v437
      %443 = vrot.lane.b32.xlu0 %v331, 119
      %v444 = vpop.permute.xlu0 %443
      %445 = vrot.lane.b32.xlu0 %v332, 119
      %v446 = vpop.permute.xlu0 %445
      %447 = vrot.lane.b32.xlu0 %v333, 119
      %v448 = vpop.permute.xlu0 %447
      %449 = vrot.lane.b32.xlu0 %v334, 119
      %v450 = vpop.permute.xlu0 %449
      %vm451 = vcmask 973824
      %v452 = vsel %vm451, %v444, %v446
      %v453 = vsel %vm451, %v448, %v450
      %456 = vrot.lane.b32.xlu0 %v331, 118
      %v457 = vpop.permute.xlu0 %456
      %458 = vrot.lane.b32.xlu0 %v332, 118
      %v459 = vpop.permute.xlu0 %458
      %460 = vrot.lane.b32.xlu0 %v333, 118
      %v461 = vpop.permute.xlu0 %460
      %462 = vrot.lane.b32.xlu0 %v334, 118
      %v463 = vpop.permute.xlu0 %462
      %vm464 = vcmask 965632
      %v465 = vsel %vm464, %v457, %v459
      %v466 = vsel %vm464, %v461, %v463
      %469 = vrot.lane.b32.xlu0 %v331, 117
      %v470 = vpop.permute.xlu0 %469
      %471 = vrot.lane.b32.xlu0 %v332, 117
      %v472 = vpop.permute.xlu0 %471
      %473 = vrot.lane.b32.xlu0 %v333, 117
      %v474 = vpop.permute.xlu0 %473
      %475 = vrot.lane.b32.xlu0 %v334, 117
      %v476 = vpop.permute.xlu0 %475
      %vm477 = vcmask 957440
      %v478 = vsel %vm477, %v470, %v472
      %v479 = vsel %vm477, %v474, %v476
      %482 = vrot.lane.b32.xlu0 %v331, 116
      %v483 = vpop.permute.xlu0 %482
      %484 = vrot.lane.b32.xlu0 %v332, 116
      %v485 = vpop.permute.xlu0 %484
      %486 = vrot.lane.b32.xlu0 %v333, 116
      %v487 = vpop.permute.xlu0 %486
      %488 = vrot.lane.b32.xlu0 %v334, 116
      %v489 = vpop.permute.xlu0 %488
      %vm490 = vcmask 949248
      %v491 = vsel %vm490, %v483, %v485
      %v492 = vsel %vm490, %v487, %v489
      %495 = vrot.lane.b32.xlu0 %v331, 115
      %v496 = vpop.permute.xlu0 %495
      %497 = vrot.lane.b32.xlu0 %v332, 115
      %v498 = vpop.permute.xlu0 %497
      %499 = vrot.lane.b32.xlu0 %v333, 115
      %v500 = vpop.permute.xlu0 %499
      %501 = vrot.lane.b32.xlu0 %v334, 115
      %v502 = vpop.permute.xlu0 %501
      %vm503 = vcmask 941056
      %v504 = vsel %vm503, %v496, %v498
      %v505 = vsel %vm503, %v500, %v502
      %508 = vrot.lane.b32.xlu0 %v331, 114
      %v509 = vpop.permute.xlu0 %508
      %510 = vrot.lane.b32.xlu0 %v332, 114
      %v511 = vpop.permute.xlu0 %510
      %512 = vrot.lane.b32.xlu0 %v333, 114
      %v513 = vpop.permute.xlu0 %512
      %514 = vrot.lane.b32.xlu0 %v334, 114
      %v515 = vpop.permute.xlu0 %514
      %vm516 = vcmask 932864
      %v517 = vsel %vm516, %v509, %v511
      %v518 = vsel %vm516, %v513, %v515
      %521 = vrot.lane.b32.xlu0 %v331, 113
      %v522 = vpop.permute.xlu0 %521
      %523 = vrot.lane.b32.xlu0 %v332, 113
      %v524 = vpop.permute.xlu0 %523
      %525 = vrot.lane.b32.xlu0 %v333, 113
      %v526 = vpop.permute.xlu0 %525
      %527 = vrot.lane.b32.xlu0 %v334, 113
      %v528 = vpop.permute.xlu0 %527
      %vm529 = vcmask 924672
      %v530 = vsel %vm529, %v522, %v524
      %v531 = vsel %vm529, %v526, %v528
      %v534 = vld [vmem:[%s1] sm:$0xff]
      %v535 = vld [vmem:[%s1 + $0x8] sm:$0xff]
      %v536 = vld [vmem:[%s1 + $0x10] sm:$0xff]
      %v537 = vld [vmem:[%s1 + $0x18] sm:$0xff]
      %v538 = vld [vmem:[%s2] sm:$0xff]
      %v539 = vld [vmem:[%s2 + $0x8] sm:$0xff]
      %541 = vset.pattern.permute.xlu0 0
      %542 = vperm.xlu0 %541, %v538
      %v543 = vpop.permute.xlu0 %542
      %546 = vset.pattern.permute.xlu0 0
      %547 = vperm.xlu0 %546, %v539
      %v548 = vpop.permute.xlu0 %547
      %550 = vmatprep.subr.mxu0 0.0
      %551 = vmatpush1.msra.mxu0 %v427
      %552 = vmatprep.subr.mxu0 0.0
      %553 = vmatpush1.msra.mxu0 %v426
      %554 = vmatprep.subr.mxu0 0.0
      %555 = vmatpush1.msra.mxu0 %v414
      %556 = vmatprep.subr.mxu0 0.0
      %557 = vmatpush1.msra.mxu0 %v413
      %558 = vmatprep.subr.mxu0 0.0
      %559 = vmatpush1.msra.mxu0 %v401
      %560 = vmatprep.subr.mxu0 0.0
      %561 = vmatpush1.msra.mxu0 %v400
      %562 = vmatprep.subr.mxu0 0.0
      %563 = vmatpush1.msra.mxu0 %v388
      %564 = vmatprep.subr.mxu0 0.0
      %565 = vmatpush1.msra.mxu0 %v387
      %566 = vmatprep.subr.mxu0 0.0
      %567 = vmatpush1.msra.mxu0 %v375
      %568 = vmatprep.subr.mxu0 0.0
      %569 = vmatpush1.msra.mxu0 %v374
      %570 = vmatprep.subr.mxu0 0.0
      %571 = vmatpush1.msra.mxu0 %v362
      %572 = vmatprep.subr.mxu0 0.0
      %573 = vmatpush1.msra.mxu0 %v361
      %574 = vmatprep.subr.mxu0 0.0
      %575 = vmatpush1.msra.mxu0 %v349
      %576 = vmatprep.subr.mxu0 0.0
      %577 = vmatpush1.msra.mxu0 %v348
      %578 = vmatprep.subr.mxu0 0.0
      %579 = vmatpush1.msra.mxu0 %v333
      %580 = vmatprep.subr.mxu0 0.0
      %581 = vmatpush1.msra.mxu0 %v331
      %582 = vmatprep.subr.mxu0 0.0
      %583 = vmatpush2.msra.mxu0 %v531
      %584 = vmatprep.subr.mxu0 0.0
      %585 = vmatpush2.msra.mxu0 %v530
      %586 = vmatprep.subr.mxu0 0.0
      %587 = vmatpush2.msra.mxu0 %v518
      %588 = vmatprep.subr.mxu0 0.0
      %589 = vmatpush2.msra.mxu0 %v517
      %590 = vmatprep.subr.mxu0 0.0
      %591 = vmatpush2.msra.mxu0 %v505
      %592 = vmatprep.subr.mxu0 0.0
      %593 = vmatpush2.msra.mxu0 %v504
      %594 = vmatprep.subr.mxu0 0.0
      %595 = vmatpush2.msra.mxu0 %v492
      %596 = vmatprep.subr.mxu0 0.0
      %597 = vmatpush2.msra.mxu0 %v491
      %598 = vmatprep.subr.mxu0 0.0
      %599 = vmatpush2.msra.mxu0 %v479
      %600 = vmatprep.subr.mxu0 0.0
      %601 = vmatpush2.msra.mxu0 %v478
      %602 = vmatprep.subr.mxu0 0.0
      %603 = vmatpush2.msra.mxu0 %v466
      %604 = vmatprep.subr.mxu0 0.0
      %605 = vmatpush2.msra.mxu0 %v465
      %606 = vmatprep.subr.mxu0 0.0
      %607 = vmatpush2.msra.mxu0 %v453
      %608 = vmatprep.subr.mxu0 0.0
      %609 = vmatpush2.msra.mxu0 %v452
      %610 = vmatprep.subr.mxu0 0.0
      %611 = vmatpush2.msra.mxu0 %v440
      %612 = vmatprep.subr.mxu0 0.0
      %613 = vmatpush2.msra.mxu0 %v439
      %614 = vmatprep.mubr.f32.mxu0 %v535
      %615 = vmatmul.mubr.f32.gmra.mxu0 %v534
      %v616 = vpop.f32.mrf.mxu0
      %v617 = vadd.f32 %v543, %v616
      %v618 = vpop.f32.mrf.mxu0
      %619 = vmatprep.mubr.f32.mxu0 %v537
      %620 = vmatmul.mubr.f32.gmra.mxu0 %v536
      %v621 = vpop.f32.mrf.mxu0
      %v622 = vadd.f32 %v548, %v621
      %v623 = vpop.f32.mrf.mxu0
      %624 = vdwg.mxu0
      %vm625 = vcmp.gt.f32.partialorder %v617, 0.0
      %vm626 = vcmp.gt.f32.partialorder %v622, 0.0
      %v627 = vmin.f32 %v617, 0.0
      %v628 = vmin.f32 %v622, 0.0
      %v629 = vmul.f32 %v627, 1.442695
      %v630 = vpow.pop %v629
      %v631 = vmul.f32 %v628, 1.442695
      %v632 = vpow.pop %v631
      %v633 = vsub.f32 %v630, 1.0
      %v634 = vsub.f32 %v632, 1.0
      %v635 = vsel %vm625, %v617, %v633
      %v636 = vsel %vm626, %v622, %v634
      %v637 = vld [vmem:[%s3] sm:$0xff]
      %v638 = vld [vmem:[%s3 + $0x8] sm:$0xff]
      %v639 = vld [vmem:[%s3 + $0x10] sm:$0xff]
      %v640 = vld [vmem:[%s3 + $0x18] sm:$0xff]
      %v641 = vld [vmem:[%s3 + $0x20] sm:$0xff]
      %v642 = vld [vmem:[%s3 + $0x28] sm:$0xff]
      %v643 = vld [vmem:[%s3 + $0x30] sm:$0xff]
      %v644 = vld [vmem:[%s3 + $0x38] sm:$0xff]
      %v645 = vld [vmem:[%s3 + $0x40] sm:$0xff]
      %v646 = vld [vmem:[%s3 + $0x48] sm:$0xff]
      %v647 = vld [vmem:[%s3 + $0x50] sm:$0xff]
      %v648 = vld [vmem:[%s3 + $0x58] sm:$0xff]
      %v649 = vld [vmem:[%s3 + $0x60] sm:$0xff]
      %v650 = vld [vmem:[%s3 + $0x68] sm:$0xff]
      %v651 = vld [vmem:[%s3 + $0x70] sm:$0xff]
      %v652 = vld [vmem:[%s3 + $0x78] sm:$0xff]
      %653 = vmatprep.subr.mxu0 0.0
      %654 = vmatpush1.msra.mxu0 %v652
      %655 = vmatprep.subr.mxu0 0.0
      %656 = vmatpush1.msra.mxu0 %v651
      %657 = vmatprep.subr.mxu0 0.0
      %658 = vmatpush1.msra.mxu0 %v650
      %659 = vmatprep.subr.mxu0 0.0
      %660 = vmatpush1.msra.mxu0 %v649
      %661 = vmatprep.subr.mxu0 0.0
      %662 = vmatpush1.msra.mxu0 %v648
      %663 = vmatprep.subr.mxu0 0.0
      %664 = vmatpush1.msra.mxu0 %v647
      %665 = vmatprep.subr.mxu0 0.0
      %666 = vmatpush1.msra.mxu0 %v646
      %667 = vmatprep.subr.mxu0 0.0
      %668 = vmatpush1.msra.mxu0 %v645
      %669 = vmatprep.subr.mxu0 0.0
      %670 = vmatpush1.msra.mxu0 %v644
      %671 = vmatprep.subr.mxu0 0.0
      %672 = vmatpush1.msra.mxu0 %v643
      %673 = vmatprep.subr.mxu0 0.0
      %674 = vmatpush1.msra.mxu0 %v642
      %675 = vmatprep.subr.mxu0 0.0
      %676 = vmatpush1.msra.mxu0 %v641
      %677 = vmatprep.subr.mxu0 0.0
      %678 = vmatpush1.msra.mxu0 %v640
      %679 = vmatprep.subr.mxu0 0.0
      %680 = vmatpush1.msra.mxu0 %v639
      %681 = vmatprep.subr.mxu0 0.0
      %682 = vmatpush1.msra.mxu0 %v638
      %683 = vmatprep.subr.mxu0 0.0
      %684 = vmatpush1.msra.mxu0 %v637
      %685 = vmatprep.subr.mxu0 0.0
      %686 = vmatpush2.msra.mxu0 0.0
      %687 = vmatprep.subr.mxu0 0.0
      %688 = vmatpush2.msra.mxu0 0.0
      %689 = vmatprep.subr.mxu0 0.0
      %690 = vmatpush2.msra.mxu0 0.0
      %691 = vmatprep.subr.mxu0 0.0
      %692 = vmatpush2.msra.mxu0 0.0
      %693 = vmatprep.subr.mxu0 0.0
      %694 = vmatpush2.msra.mxu0 0.0
      %695 = vmatprep.subr.mxu0 0.0
      %696 = vmatpush2.msra.mxu0 0.0
      %697 = vmatprep.subr.mxu0 0.0
      %698 = vmatpush2.msra.mxu0 0.0
      %699 = vmatprep.subr.mxu0 0.0
      %700 = vmatpush2.msra.mxu0 0.0
      %701 = vmatprep.subr.mxu0 0.0
      %702 = vmatpush2.msra.mxu0 0.0
      %703 = vmatprep.subr.mxu0 0.0
      %704 = vmatpush2.msra.mxu0 0.0
      %705 = vmatprep.subr.mxu0 0.0
      %706 = vmatpush2.msra.mxu0 0.0
      %707 = vmatprep.subr.mxu0 0.0
      %708 = vmatpush2.msra.mxu0 0.0
      %709 = vmatprep.subr.mxu0 0.0
      %710 = vmatpush2.msra.mxu0 0.0
      %711 = vmatprep.subr.mxu0 0.0
      %712 = vmatpush2.msra.mxu0 0.0
      %713 = vmatprep.subr.mxu0 0.0
      %714 = vmatpush2.msra.mxu0 0.0
      %715 = vmatprep.subr.mxu0 0.0
      %716 = vmatpush2.msra.mxu0 0.0
      %717 = vmatprep.mubr.f32.mxu0 0.0
      %718 = vmatmul.mubr.f32.gmra.mxu0 %v635
      %v719 = vpop.f32.mrf.mxu0
      %v720 = vadd.f32 0.0, %v719
      %v721 = vpop.f32.mrf.mxu0
      %722 = vmatprep.mubr.f32.mxu0 0.0
      %723 = vmatmul.mubr.f32.gmra.mxu0 %v636
      %v724 = vpop.f32.mrf.mxu0
      %v725 = vadd.f32 0.0, %v724
      %v726 = vpop.f32.mrf.mxu0
      %727 = vdwg.mxu0
      %730 = vrot.lane.b32.xlu0 %v720, 127
      %v731 = vpop.permute.xlu0 %730
      %732 = vrot.lane.b32.xlu0 %v725, 127
      %v733 = vpop.permute.xlu0 %732
      %736 = vrot.lane.b32.xlu0 %v720, 126
      %v737 = vpop.permute.xlu0 %736
      %738 = vrot.lane.b32.xlu0 %v725, 126
      %v739 = vpop.permute.xlu0 %738
      %742 = vrot.lane.b32.xlu0 %v720, 125
      %v743 = vpop.permute.xlu0 %742
      %744 = vrot.lane.b32.xlu0 %v725, 125
      %v745 = vpop.permute.xlu0 %744
      %748 = vrot.lane.b32.xlu0 %v720, 124
      %v749 = vpop.permute.xlu0 %748
      %750 = vrot.lane.b32.xlu0 %v725, 124
      %v751 = vpop.permute.xlu0 %750
      %754 = vrot.lane.b32.xlu0 %v720, 123
      %v755 = vpop.permute.xlu0 %754
      %756 = vrot.lane.b32.xlu0 %v725, 123
      %v757 = vpop.permute.xlu0 %756
      %760 = vrot.lane.b32.xlu0 %v720, 122
      %v761 = vpop.permute.xlu0 %760
      %762 = vrot.lane.b32.xlu0 %v725, 122
      %v763 = vpop.permute.xlu0 %762
      %766 = vrot.lane.b32.xlu0 %v720, 121
      %v767 = vpop.permute.xlu0 %766
      %768 = vrot.lane.b32.xlu0 %v725, 121
      %v769 = vpop.permute.xlu0 %768
      %v772 = vld [vmem:[%s4] sm:$0xff]
      %v773 = vld [vmem:[%s4 + $0x8] sm:$0xff]
      %v774 = vld [vmem:[%s5] sm:$0xff]
      %v775 = vld [vmem:[%s5 + $0x8] sm:$0xff]
      %777 = vset.pattern.permute.xlu0 0
      %778 = vperm.xlu0 %777, %v774
      %v779 = vpop.permute.xlu0 %778
      %782 = vset.pattern.permute.xlu0 0
      %783 = vperm.xlu0 %782, %v775
      %v784 = vpop.permute.xlu0 %783
      %786 = vmatprep.subr.mxu0 0.0
      %787 = vmatpush1.msra.mxu0 %v769
      %788 = vmatprep.subr.mxu0 0.0
      %789 = vmatpush1.msra.mxu0 %v767
      %790 = vmatprep.subr.mxu0 0.0
      %791 = vmatpush1.msra.mxu0 %v763
      %792 = vmatprep.subr.mxu0 0.0
      %793 = vmatpush1.msra.mxu0 %v761
      %794 = vmatprep.subr.mxu0 0.0
      %795 = vmatpush1.msra.mxu0 %v757
      %796 = vmatprep.subr.mxu0 0.0
      %797 = vmatpush1.msra.mxu0 %v755
      %798 = vmatprep.subr.mxu0 0.0
      %799 = vmatpush1.msra.mxu0 %v751
      %800 = vmatprep.subr.mxu0 0.0
      %801 = vmatpush1.msra.mxu0 %v749
      %802 = vmatprep.subr.mxu0 0.0
      %803 = vmatpush1.msra.mxu0 %v745
      %804 = vmatprep.subr.mxu0 0.0
      %805 = vmatpush1.msra.mxu0 %v743
      %806 = vmatprep.subr.mxu0 0.0
      %807 = vmatpush1.msra.mxu0 %v739
      %808 = vmatprep.subr.mxu0 0.0
      %809 = vmatpush1.msra.mxu0 %v737
      %810 = vmatprep.subr.mxu0 0.0
      %811 = vmatpush1.msra.mxu0 %v733
      %812 = vmatprep.subr.mxu0 0.0
      %813 = vmatpush1.msra.mxu0 %v731
      %814 = vmatprep.subr.mxu0 0.0
      %815 = vmatpush1.msra.mxu0 %v725
      %816 = vmatprep.subr.mxu0 0.0
      %817 = vmatpush1.msra.mxu0 %v720
      %818 = vmatprep.subr.mxu0 0.0
      %819 = vmatpush2.msra.mxu0 0.0
      %820 = vmatprep.subr.mxu0 0.0
      %821 = vmatpush2.msra.mxu0 0.0
      %822 = vmatprep.subr.mxu0 0.0
      %823 = vmatpush2.msra.mxu0 0.0
      %824 = vmatprep.subr.mxu0 0.0
      %825 = vmatpush2.msra.mxu0 0.0
      %826 = vmatprep.subr.mxu0 0.0
      %827 = vmatpush2.msra.mxu0 0.0
      %828 = vmatprep.subr.mxu0 0.0
      %829 = vmatpush2.msra.mxu0 0.0
      %830 = vmatprep.subr.mxu0 0.0
      %831 = vmatpush2.msra.mxu0 0.0
      %832 = vmatprep.subr.mxu0 0.0
      %833 = vmatpush2.msra.mxu0 0.0
      %834 = vmatprep.subr.mxu0 0.0
      %835 = vmatpush2.msra.mxu0 0.0
      %836 = vmatprep.subr.mxu0 0.0
      %837 = vmatpush2.msra.mxu0 0.0
      %838 = vmatprep.subr.mxu0 0.0
      %839 = vmatpush2.msra.mxu0 0.0
      %840 = vmatprep.subr.mxu0 0.0
      %841 = vmatpush2.msra.mxu0 0.0
      %842 = vmatprep.subr.mxu0 0.0
      %843 = vmatpush2.msra.mxu0 0.0
      %844 = vmatprep.subr.mxu0 0.0
      %845 = vmatpush2.msra.mxu0 0.0
      %846 = vmatprep.subr.mxu0 0.0
      %847 = vmatpush2.msra.mxu0 0.0
      %848 = vmatprep.subr.mxu0 0.0
      %849 = vmatpush2.msra.mxu0 0.0
      %850 = vmatprep.mubr.f32.mxu0 0.0
      %851 = vmatmul.mubr.f32.gmra.mxu0 %v772
      %v852 = vpop.f32.mrf.mxu0
      %v853 = vadd.f32 %v779, %v852
      %v854 = vpop.f32.mrf.mxu0
      %855 = vmatprep.mubr.f32.mxu0 0.0
      %856 = vmatmul.mubr.f32.gmra.mxu0 %v773
      %v857 = vpop.f32.mrf.mxu0
      %v858 = vadd.f32 %v784, %v857
      %v859 = vpop.f32.mrf.mxu0
      %860 = vdwg.mxu0
      %vm861 = vcmp.gt.f32.partialorder %v853, 0.0
      %vm862 = vcmp.gt.f32.partialorder %v858, 0.0
      %v863 = vmin.f32 %v853, 0.0
      %v864 = vmin.f32 %v858, 0.0
      %v865 = vmul.f32 %v863, 1.442695
      %v866 = vpow.pop %v865
      %v867 = vmul.f32 %v864, 1.442695
      %v868 = vpow.pop %v867
      %v869 = vsub.f32 %v866, 1.0
      %v870 = vsub.f32 %v868, 1.0
      %v871 = vsel %vm861, %v853, %v869
      %v872 = vsel %vm862, %v858, %v870
      %v873 = vld [vmem:[%s6] sm:$0xff]
      %v874 = vld [vmem:[%s6 + $0x8] sm:$0xff]
      %v875 = vld [vmem:[%s6 + $0x10] sm:$0xff]
      %v876 = vld [vmem:[%s6 + $0x18] sm:$0xff]
      %vm877 = vcmask 261120
      %v879 = vsel %vm877, %v871, 0
      %v882 = vsel %vm877, %v872, 0
      %884 = vmatprep.subr.mxu0 0.0
      %885 = vmatpush1.msra.mxu0 0.0
      %886 = vmatprep.subr.mxu0 0.0
      %887 = vmatpush1.msra.mxu0 0.0
      %888 = vmatprep.subr.mxu0 0.0
      %889 = vmatpush1.msra.mxu0 0.0
      %890 = vmatprep.subr.mxu0 0.0
      %891 = vmatpush1.msra.mxu0 0.0
      %892 = vmatprep.subr.mxu0 0.0
      %893 = vmatpush1.msra.mxu0 0.0
      %894 = vmatprep.subr.mxu0 0.0
      %895 = vmatpush1.msra.mxu0 0.0
      %896 = vmatprep.subr.mxu0 0.0
      %897 = vmatpush1.msra.mxu0 0.0
      %898 = vmatprep.subr.mxu0 0.0
      %899 = vmatpush1.msra.mxu0 0.0
      %900 = vmatprep.subr.mxu0 0.0
      %901 = vmatpush1.msra.mxu0 0.0
      %902 = vmatprep.subr.mxu0 0.0
      %903 = vmatpush1.msra.mxu0 0.0
      %904 = vmatprep.subr.mxu0 0.0
      %905 = vmatpush1.msra.mxu0 0.0
      %906 = vmatprep.subr.mxu0 0.0
      %907 = vmatpush1.msra.mxu0 0.0
      %908 = vmatprep.subr.mxu0 0.0
      %909 = vmatpush1.msra.mxu0 %v876
      %910 = vmatprep.subr.mxu0 0.0
      %911 = vmatpush1.msra.mxu0 %v875
      %912 = vmatprep.subr.mxu0 0.0
      %913 = vmatpush1.msra.mxu0 %v874
      %914 = vmatprep.subr.mxu0 0.0
      %915 = vmatpush1.msra.mxu0 %v873
      %916 = vmatprep.subr.mxu0 0.0
      %917 = vmatpush2.msra.mxu0 0.0
      %918 = vmatprep.subr.mxu0 0.0
      %919 = vmatpush2.msra.mxu0 0.0
      %920 = vmatprep.subr.mxu0 0.0
      %921 = vmatpush2.msra.mxu0 0.0
      %922 = vmatprep.subr.mxu0 0.0
      %923 = vmatpush2.msra.mxu0 0.0
      %924 = vmatprep.subr.mxu0 0.0
      %925 = vmatpush2.msra.mxu0 0.0
      %926 = vmatprep.subr.mxu0 0.0
      %927 = vmatpush2.msra.mxu0 0.0
      %928 = vmatprep.subr.mxu0 0.0
      %929 = vmatpush2.msra.mxu0 0.0
      %930 = vmatprep.subr.mxu0 0.0
      %931 = vmatpush2.msra.mxu0 0.0
      %932 = vmatprep.subr.mxu0 0.0
      %933 = vmatpush2.msra.mxu0 0.0
      %934 = vmatprep.subr.mxu0 0.0
      %935 = vmatpush2.msra.mxu0 0.0
      %936 = vmatprep.subr.mxu0 0.0
      %937 = vmatpush2.msra.mxu0 0.0
      %938 = vmatprep.subr.mxu0 0.0
      %939 = vmatpush2.msra.mxu0 0.0
      %940 = vmatprep.subr.mxu0 0.0
      %941 = vmatpush2.msra.mxu0 0.0
      %942 = vmatprep.subr.mxu0 0.0
      %943 = vmatpush2.msra.mxu0 0.0
      %944 = vmatprep.subr.mxu0 0.0
      %945 = vmatpush2.msra.mxu0 0.0
      %946 = vmatprep.subr.mxu0 0.0
      %947 = vmatpush2.msra.mxu0 0.0
      %948 = vmatprep.mubr.f32.mxu0 0.0
      %949 = vmatmul.mubr.f32.gmra.mxu0 %v879
      %v950 = vpop.f32.mrf.mxu0
      %v951 = vadd.f32 0.0, %v950
      %v952 = vpop.f32.mrf.mxu0
      %953 = vmatprep.mubr.f32.mxu0 0.0
      %954 = vmatmul.mubr.f32.gmra.mxu0 %v882
      %v955 = vpop.f32.mrf.mxu0
      %v956 = vadd.f32 0.0, %v955
      %v957 = vpop.f32.mrf.mxu0
      %958 = vdwg.mxu0
      %v960 = vrot.slane %v951, 1
      %961 = vrot.lane.b32.xlu0 %v960, 4
      %v962 = vpop.permute.xlu0 %961
      %v964 = vrot.slane %v951, 2
      %965 = vrot.lane.b32.xlu0 %v964, 8
      %v966 = vpop.permute.xlu0 %965
      %v968 = vrot.slane %v951, 3
      %969 = vrot.lane.b32.xlu0 %v968, 12
      %v970 = vpop.permute.xlu0 %969
      %v972 = vrot.slane %v951, 4
      %973 = vrot.lane.b32.xlu0 %v972, 16
      %v974 = vpop.permute.xlu0 %973
      %v976 = vrot.slane %v951, 5
      %977 = vrot.lane.b32.xlu0 %v976, 20
      %v978 = vpop.permute.xlu0 %977
      %v980 = vrot.slane %v951, 6
      %981 = vrot.lane.b32.xlu0 %v980, 24
      %v982 = vpop.permute.xlu0 %981
      %v984 = vrot.slane %v951, 7
      %985 = vrot.lane.b32.xlu0 %v984, 28
      %v986 = vpop.permute.xlu0 %985
      %989 = vrot.lane.b32.xlu0 %v956, 32
      %v990 = vpop.permute.xlu0 %989
      %v992 = vrot.slane %v956, 1
      %993 = vrot.lane.b32.xlu0 %v992, 36
      %v994 = vpop.permute.xlu0 %993
      %v996 = vrot.slane %v956, 2
      %997 = vrot.lane.b32.xlu0 %v996, 40
      %v998 = vpop.permute.xlu0 %997
      %v1000 = vrot.slane %v956, 3
      %1001 = vrot.lane.b32.xlu0 %v1000, 44
      %v1002 = vpop.permute.xlu0 %1001
      %v1004 = vrot.slane %v956, 4
      %1005 = vrot.lane.b32.xlu0 %v1004, 48
      %v1006 = vpop.permute.xlu0 %1005
      %v1008 = vrot.slane %v956, 5
      %1009 = vrot.lane.b32.xlu0 %v1008, 52
      %v1010 = vpop.permute.xlu0 %1009
      %v1012 = vrot.slane %v956, 6
      %1013 = vrot.lane.b32.xlu0 %v1012, 56
      %v1014 = vpop.permute.xlu0 %1013
      %v1016 = vrot.slane %v956, 7
      %1017 = vrot.lane.b32.xlu0 %v1016, 60
      %v1018 = vpop.permute.xlu0 %1017
      %vm1020 = vcmask 31744
      %v1021 = vsel %vm1020, %v951, %v962
      %vm1022 = vcmask 64512
      %v1023 = vsel %vm1022, %v1021, %v966
      %vm1024 = vcmask 97280
      %v1025 = vsel %vm1024, %v1023, %v970
      %vm1026 = vcmask 130048
      %v1027 = vsel %vm1026, %v1025, %v974
      %vm1028 = vcmask 162816
      %v1029 = vsel %vm1028, %v1027, %v978
      %vm1030 = vcmask 195584
      %v1031 = vsel %vm1030, %v1029, %v982
      %vm1032 = vcmask 228352
      %v1033 = vsel %vm1032, %v1031, %v986
      %v1034 = vsel %vm877, %v1033, %v990
      %vm1035 = vcmask 293888
      %v1036 = vsel %vm1035, %v1034, %v994
      %vm1037 = vcmask 326656
      %v1038 = vsel %vm1037, %v1036, %v998
      %vm1039 = vcmask 359424
      %v1040 = vsel %vm1039, %v1038, %v1002
      %vm1041 = vcmask 392192
      %v1042 = vsel %vm1041, %v1040, %v1006
      %vm1043 = vcmask 424960
      %v1044 = vsel %vm1043, %v1042, %v1010
      %vm1045 = vcmask 457728
      %v1046 = vsel %vm1045, %v1044, %v1014
      %vm1047 = vcmask 490496
      %v1048 = vsel %vm1047, %v1046, %v1018
      %v1049 = vld [vmem:[%s7] sm:$0xff]
      %v1050 = vld [vmem:[%s7 + $0x8] sm:$0xff]
      %v1051 = vld [vmem:[%s7 + $0x10] sm:$0xff]
      %v1052 = vld [vmem:[%s7 + $0x18] sm:$0xff]
      %v1053 = vld [vmem:[%s7 + $0x20] sm:$0xff]
      %v1054 = vld [vmem:[%s7 + $0x28] sm:$0xff]
      %v1055 = vld [vmem:[%s7 + $0x30] sm:$0xff]
      %v1056 = vld [vmem:[%s7 + $0x38] sm:$0xff]
      %v1057 = vld [vmem:[%s7 + $0x40] sm:$0xff]
      %v1058 = vld [vmem:[%s7 + $0x48] sm:$0xff]
      %v1059 = vld [vmem:[%s7 + $0x50] sm:$0xff]
      %v1060 = vld [vmem:[%s7 + $0x58] sm:$0xff]
      %v1061 = vld [vmem:[%s7 + $0x60] sm:$0xff]
      %v1062 = vld [vmem:[%s7 + $0x68] sm:$0xff]
      %v1063 = vld [vmem:[%s7 + $0x70] sm:$0xff]
      %v1064 = vld [vmem:[%s7 + $0x78] sm:$0xff]
      %v1065 = vld [vmem:[%s7 + $0x80] sm:$0xff]
      %v1066 = vld [vmem:[%s7 + $0x88] sm:$0xff]
      %v1067 = vld [vmem:[%s7 + $0x90] sm:$0xff]
      %v1068 = vld [vmem:[%s7 + $0x98] sm:$0xff]
      %v1069 = vld [vmem:[%s7 + $0xa0] sm:$0xff]
      %v1070 = vld [vmem:[%s7 + $0xa8] sm:$0xff]
      %v1071 = vld [vmem:[%s7 + $0xb0] sm:$0xff]
      %v1072 = vld [vmem:[%s7 + $0xb8] sm:$0xff]
      %v1073 = vld [vmem:[%s7 + $0xc0] sm:$0xff]
      %v1074 = vld [vmem:[%s7 + $0xc8] sm:$0xff]
      %v1075 = vld [vmem:[%s7 + $0xd0] sm:$0xff]
      %v1076 = vld [vmem:[%s7 + $0xd8] sm:$0xff]
      %v1077 = vld [vmem:[%s7 + $0xe0] sm:$0xff]
      %v1078 = vld [vmem:[%s7 + $0xe8] sm:$0xff]
      %v1079 = vld [vmem:[%s7 + $0xf0] sm:$0xff]
      %v1080 = vld [vmem:[%s7 + $0xf8] sm:$0xff]
      %v1081 = vld [vmem:[%s8] sm:$0xf]
      %v1083 = vlaneseq
      %v1084 = vshrl.u32 %v1083, 7
      %v1085 = vsub.s32 0, %v1084
      %v1086 = vrot.slane %v1081, %v1085
      %v1087 = vlaneseq
      %v1088 = vshrl.u32 %v1087, 7
      %v1089 = vsub.s32 1, %v1088
      %v1090 = vrot.slane %v1081, %v1089
      %v1091 = vlaneseq
      %v1092 = vshrl.u32 %v1091, 7
      %v1093 = vsub.s32 2, %v1092
      %v1094 = vrot.slane %v1081, %v1093
      %v1095 = vlaneseq
      %v1096 = vshrl.u32 %v1095, 7
      %v1097 = vsub.s32 3, %v1096
      %v1098 = vrot.slane %v1081, %v1097
      %vm1103 = vcmask 523264
      %v1105 = vsel %vm1103, %v1048, 0
      %1107 = vmatprep.subr.mxu0 0.0
      %1108 = vmatpush1.msra.mxu0 0.0
      %1109 = vmatprep.subr.mxu0 0.0
      %1110 = vmatpush1.msra.mxu0 0.0
      %1111 = vmatprep.subr.mxu0 0.0
      %1112 = vmatpush1.msra.mxu0 0.0
      %1113 = vmatprep.subr.mxu0 0.0
      %1114 = vmatpush1.msra.mxu0 0.0
      %1115 = vmatprep.subr.mxu0 0.0
      %1116 = vmatpush1.msra.mxu0 0.0
      %1117 = vmatprep.subr.mxu0 0.0
      %1118 = vmatpush1.msra.mxu0 0.0
      %1119 = vmatprep.subr.mxu0 0.0
      %1120 = vmatpush1.msra.mxu0 0.0
      %1121 = vmatprep.subr.mxu0 0.0
      %1122 = vmatpush1.msra.mxu0 0.0
      %1123 = vmatprep.subr.mxu0 %v1078
      %1124 = vmatpush1.msra.mxu0 %v1077
      %1125 = vmatprep.subr.mxu0 %v1074
      %1126 = vmatpush1.msra.mxu0 %v1073
      %1127 = vmatprep.subr.mxu0 %v1070
      %1128 = vmatpush1.msra.mxu0 %v1069
      %1129 = vmatprep.subr.mxu0 %v1066
      %1130 = vmatpush1.msra.mxu0 %v1065
      %1131 = vmatprep.subr.mxu0 %v1062
      %1132 = vmatpush1.msra.mxu0 %v1061
      %1133 = vmatprep.subr.mxu0 %v1058
      %1134 = vmatpush1.msra.mxu0 %v1057
      %1135 = vmatprep.subr.mxu0 %v1054
      %1136 = vmatpush1.msra.mxu0 %v1053
      %1137 = vmatprep.subr.mxu0 %v1050
      %1138 = vmatpush1.msra.mxu0 %v1049
      %1139 = vmatprep.subr.mxu0 0.0
      %1140 = vmatpush2.msra.mxu0 0.0
      %1141 = vmatprep.subr.mxu0 0.0
      %1142 = vmatpush2.msra.mxu0 0.0
      %1143 = vmatprep.subr.mxu0 0.0
      %1144 = vmatpush2.msra.mxu0 0.0
      %1145 = vmatprep.subr.mxu0 0.0
      %1146 = vmatpush2.msra.mxu0 0.0
      %1147 = vmatprep.subr.mxu0 0.0
      %1148 = vmatpush2.msra.mxu0 0.0
      %1149 = vmatprep.subr.mxu0 0.0
      %1150 = vmatpush2.msra.mxu0 0.0
      %1151 = vmatprep.subr.mxu0 0.0
      %1152 = vmatpush2.msra.mxu0 0.0
      %1153 = vmatprep.subr.mxu0 0.0
      %1154 = vmatpush2.msra.mxu0 0.0
      %1155 = vmatprep.subr.mxu0 0.0
      %1156 = vmatpush2.msra.mxu0 0.0
      %1157 = vmatprep.subr.mxu0 0.0
      %1158 = vmatpush2.msra.mxu0 0.0
      %1159 = vmatprep.subr.mxu0 0.0
      %1160 = vmatpush2.msra.mxu0 0.0
      %1161 = vmatprep.subr.mxu0 0.0
      %1162 = vmatpush2.msra.mxu0 0.0
      %1163 = vmatprep.subr.mxu0 0.0
      %1164 = vmatpush2.msra.mxu0 0.0
      %1165 = vmatprep.subr.mxu0 0.0
      %1166 = vmatpush2.msra.mxu0 0.0
      %1167 = vmatprep.subr.mxu0 0.0
      %1168 = vmatpush2.msra.mxu0 0.0
      %1169 = vmatprep.subr.mxu0 0.0
      %1170 = vmatpush2.msra.mxu0 0.0
      %1171 = vmatprep.mubr.f32.mxu0 0.0
      %1172 = vmatmul.mubr.f32.gmra.mxu0 %v1105
      %v1173 = vpop.f32.mrf.mxu0
      %v1174 = vadd.f32 %v1086, %v1173
      %v1175 = vpop.f32.mrf.mxu0
      %v1176 = vadd.f32 %v1090, %v1175
      %1177 = vdwg.mxu0
      %1178 = vmatprep.subr.mxu0 0.0
      %1179 = vmatpush1.msra.mxu0 0.0
      %1180 = vmatprep.subr.mxu0 0.0
      %1181 = vmatpush1.msra.mxu0 0.0
      %1182 = vmatprep.subr.mxu0 0.0
      %1183 = vmatpush1.msra.mxu0 0.0
      %1184 = vmatprep.subr.mxu0 0.0
      %1185 = vmatpush1.msra.mxu0 0.0
      %1186 = vmatprep.subr.mxu0 0.0
      %1187 = vmatpush1.msra.mxu0 0.0
      %1188 = vmatprep.subr.mxu0 0.0
      %1189 = vmatpush1.msra.mxu0 0.0
      %1190 = vmatprep.subr.mxu0 0.0
      %1191 = vmatpush1.msra.mxu0 0.0
      %1192 = vmatprep.subr.mxu0 0.0
      %1193 = vmatpush1.msra.mxu0 0.0
      %1194 = vmatprep.subr.mxu0 %v1080
      %1195 = vmatpush1.msra.mxu0 %v1079
      %1196 = vmatprep.subr.mxu0 %v1076
      %1197 = vmatpush1.msra.mxu0 %v1075
      %1198 = vmatprep.subr.mxu0 %v1072
      %1199 = vmatpush1.msra.mxu0 %v1071
      %1200 = vmatprep.subr.mxu0 %v1068
      %1201 = vmatpush1.msra.mxu0 %v1067
      %1202 = vmatprep.subr.mxu0 %v1064
      %1203 = vmatpush1.msra.mxu0 %v1063
      %1204 = vmatprep.subr.mxu0 %v1060
      %1205 = vmatpush1.msra.mxu0 %v1059
      %1206 = vmatprep.subr.mxu0 %v1056
      %1207 = vmatpush1.msra.mxu0 %v1055
      %1208 = vmatprep.subr.mxu0 %v1052
      %1209 = vmatpush1.msra.mxu0 %v1051
      %1210 = vmatprep.subr.mxu0 0.0
      %1211 = vmatpush2.msra.mxu0 0.0
      %1212 = vmatprep.subr.mxu0 0.0
      %1213 = vmatpush2.msra.mxu0 0.0
      %1214 = vmatprep.subr.mxu0 0.0
      %1215 = vmatpush2.msra.mxu0 0.0
      %1216 = vmatprep.subr.mxu0 0.0
      %1217 = vmatpush2.msra.mxu0 0.0
      %1218 = vmatprep.subr.mxu0 0.0
      %1219 = vmatpush2.msra.mxu0 0.0
      %1220 = vmatprep.subr.mxu0 0.0
      %1221 = vmatpush2.msra.mxu0 0.0
      %1222 = vmatprep.subr.mxu0 0.0
      %1223 = vmatpush2.msra.mxu0 0.0
      %1224 = vmatprep.subr.mxu0 0.0
      %1225 = vmatpush2.msra.mxu0 0.0
      %1226 = vmatprep.subr.mxu0 0.0
      %1227 = vmatpush2.msra.mxu0 0.0
      %1228 = vmatprep.subr.mxu0 0.0
      %1229 = vmatpush2.msra.mxu0 0.0
      %1230 = vmatprep.subr.mxu0 0.0
      %1231 = vmatpush2.msra.mxu0 0.0
      %1232 = vmatprep.subr.mxu0 0.0
      %1233 = vmatpush2.msra.mxu0 0.0
      %1234 = vmatprep.subr.mxu0 0.0
      %1235 = vmatpush2.msra.mxu0 0.0
      %1236 = vmatprep.subr.mxu0 0.0
      %1237 = vmatpush2.msra.mxu0 0.0
      %1238 = vmatprep.subr.mxu0 0.0
      %1239 = vmatpush2.msra.mxu0 0.0
      %1240 = vmatprep.subr.mxu0 0.0
      %1241 = vmatpush2.msra.mxu0 0.0
      %1242 = vmatprep.mubr.f32.mxu0 0.0
      %1243 = vmatmul.mubr.f32.gmra.mxu0 %v1105
      %v1244 = vpop.f32.mrf.mxu0
      %v1245 = vadd.f32 %v1094, %v1244
      %v1246 = vpop.f32.mrf.mxu0
      %v1247 = vadd.f32 %v1098, %v1246
      %1248 = vdwg.mxu0
      %v1253 = vcombine.low %v1174, %v1176
      %v1254 = vcombine.low %v1245, %v1247
      %v1256 = vunpack.c.l.s4 1966171168
      %v1257 = vunpack.c.0.s8 %v1256
      %v1258 = vlaneseq
      %v1259 = vshrl.u32 %v1258, 7
      %v1260 = vsub.s32 %v1257, %v1259
      %v1261 = vrot.slane %v1253, %v1260
      %v1263 = vunpack.c.l.s4 1966171168
      %v1264 = vunpack.c.0.s8 %v1263
      %v1265 = vlaneseq
      %v1266 = vshrl.u32 %v1265, 7
      %v1267 = vsub.s32 %v1264, %v1266
      %v1268 = vrot.slane %v1254, %v1267
      %v1269 = vcombine.low %v1261, %v1268
      %v1271 = vunpack.c.l.s4 1966171168
      %v1272 = vunpack.c.0.s8 %v1271
      %v1273 = vlaneseq
      %v1274 = vshrl.u32 %v1273, 7
      %v1275 = vsub.s32 %v1272, %v1274
      %v1276 = vrot.slane %v1269, %v1275
      %v1278 = vlaneseq
      %vm1279 = vcmp.ge.s32.totalorder %v1278, 0
      %vm1280 = vcmp.lt.s32.totalorder %v1278, 512
      %vm1281 = vmand %vm1279, %vm1280
      %1282 = vst.msk [vmem:[%s330] sm:$0xf] %vm1281, %v1276
      %p1283 = scmp.lt.s32.totalorder %s20, 1
      %s1284 = scalar_select %p1283, %s20, 1
      %s1285 = smul.addr %s1284, 4
      %s1286 = scalar_lea.vmem %s9, %s1285
      // Predicated region
      $region57: #{eegnet_forward.1} parent=55 // pred_check
        %p1287 = pneg %p232
      $region58: #{eegnet_forward.1} parent=55 // pred_check_branch
        %1289 = sbr.rel (%p1287) target = $region60
      $region59: #{eegnet_forward.1} parent=55 // pred_region
        _
      $region60: #{eegnet_forward.1} parent=55 // pred_fallthru
        _
    $region56: #{eegnet_forward.1} parent=5 // pred_fallthru
      _
    %p1290 = scmp.le.s32.totalorder 2, %s15
    // Predicated region
    $region61: #{eegnet_forward.1} parent=5 // pred_check
      %p1291 = pneg %p1290
    $region62: #{eegnet_forward.1} parent=5 // pred_check_branch
      %1293 = sbr.rel (%p1291) target = $region64
    $region63: #{eegnet_forward.1} parent=5 // pred_region
      %s1294 = ssub.s32 %s15, 2
      // Predicated region
      $region65: #{eegnet_forward.1} parent=63 // pred_check
        %p1295 = pneg %p238
      $region66: #{eegnet_forward.1} parent=63 // pred_check_branch
        %1297 = sbr.rel (%p1295) target = $region68
      $region67: #{eegnet_forward.1} parent=63 // pred_region
        %p1298 = scmp.lt.s32.totalorder %s21, 1
        %s1299 = scalar_select %p1298, %s21, 1
        %s1300 = smul.addr %s1299, 4
        %s1301 = scalar_lea.vmem %s9, %s1300
      $region68: #{eegnet_forward.1} parent=63 // pred_fallthru
        _
    $region64: #{eegnet_forward.1} parent=5 // pred_fallthru
      _
  $region6: #{eegnet_forward.1} parent=0 // loop_footer
    %s19 = sadd.s32 1, %s15
  $region7: #{eegnet_forward.1} parent=0 // loop_footer_branch
    %14 = sbr.rel target = $region3
  $region8: #{eegnet_forward.1} parent=0 // loop_exit
    _

</llo_original>
